<compile_context>
chip_gen: v7x
topology: tpu7x:2x2x1
jax: 0.10.0
libtpu: 0.0.40
codegen_flags: <defaults>
</compile_context>

<pallas_src>
import functools
import numpy as np
import jax
import jax.numpy as jnp
from jax import lax
from jax.experimental import pallas as pl
from jax.experimental.pallas import tpu as pltpu


def _padding(downsample, kernel_size):
    """Same as the PyTorch helper."""
    return max(0, int(np.floor((kernel_size - downsample + 1) / 2)))


def _round_up(v, m):
    return ((v + m - 1) // m) * m


# --------------------------------------------------------------------------- #
# Pallas kernel: one batch sample per grid step, (L, C) layout (time x channel)
# --------------------------------------------------------------------------- #
def _resblock_kernel(*refs, k, s, pad2, pad_front, L, L_out, has_skip_conv):
    if has_skip_conv:
        (sid_ref, x_ref, y_ref, w1_ref, w2_ref, wskip_ref, bn_ref,
         x_out_ref, y_out_ref, hpad_ref) = refs
    else:
        (sid_ref, x_ref, y_ref, w1_ref, w2_ref, bn_ref,
         x_out_ref, y_out_ref, hpad_ref) = refs
        wskip_ref = None
    del sid_ref  # only consumed by the index maps

    f32 = jnp.float32
    Cin_p = x_ref.shape[1]          # lane-padded input channels
    Cout_p = hpad_ref.shape[1]      # lane-padded output channels

    bn = bn_ref[...].astype(f32)    # (3, Cout_p): [bn1_shift, bn2_scale, bn2_shift]
    bn1_shift = bn[0:1, :]
    bn2_scale = bn[1:2, :]
    bn2_shift = bn[2:3, :]

    # ---- zero the conv2 halo rows of the persistent scratch, only once -----
    if pad2 > 0:
        @pl.when(pl.program_id(0) == 0)
        def _():
            z = jnp.zeros((pad2, Cout_p), hpad_ref.dtype)
            hpad_ref[pl.ds(pad_front - pad2, pad2), :] = z
            hpad_ref[pl.ds(pad_front + L, pad2), :] = z

    # ---- conv1 (stride 1): k accumulating tap matmuls on the MXU -----------
    # x_ref : (L + 2*pad1, Cin_p), zero padded on the host side.
    h = jnp.dot(x_ref[pl.ds(0, L), :], w1_ref[pl.ds(0, Cin_p), :],
                preferred_element_type=f32)
    for dk in range(1, k):
        h = h + jnp.dot(x_ref[pl.ds(dk, L), :],
                        w1_ref[pl.ds(dk * Cin_p, Cin_p), :],
                        preferred_element_type=f32)
    # BN1 (scale already folded into w1) + ReLU; dropout1 = identity.
    h = jnp.maximum(h + bn1_shift, 0.0)
    # Stage at a sublane-aligned offset inside the zero-padded scratch.
    hpad_ref[pl.ds(pad_front, L), :] = h.astype(hpad_ref.dtype)

    # ---- conv2 (stride = downsample): strided tap reads, accumulate --------
    base = pad_front - pad2

    def tap2(dk):
        if s == 1:
            return hpad_ref[pl.ds(base + dk, L_out), :]
        return hpad_ref[pl.ds(base + dk, L_out, stride=s), :]       # (L_out, Cout_p)

    x2 = jnp.dot(tap2(0), w2_ref[pl.ds(0, Cout_p), :], preferred_element_type=f32)
    for dk in range(1, k):
        x2 = x2 + jnp.dot(tap2(dk), w2_ref[pl.ds(dk * Cout_p, Cout_p), :],
                          preferred_element_type=f32)

    # ---- skip connection: MaxPool1d(s, s) (VPU max) + optional 1x1 conv ----
    if s > 1:
        pooled = y_ref[pl.ds(0, L_out, stride=s), :]
        for p in range(1, s):
            pooled = jnp.maximum(pooled, y_ref[pl.ds(p, L_out, stride=s), :])
    else:
        pooled = y_ref[...]                                          # (L_out, Cin_p)
    if has_skip_conv:
        x2 = x2 + jnp.dot(pooled, wskip_ref[...], preferred_element_type=f32)
    else:
        x2 = x2 + pooled.astype(f32)

    # ---- residual outputs, BN2 + ReLU; dropout2 = identity -----------------
    y_out_ref[...] = x2.astype(y_out_ref.dtype)
    x_out_ref[...] = jnp.maximum(x2 * bn2_scale + bn2_shift, 0.0).astype(x_out_ref.dtype)


# --------------------------------------------------------------------------- #
# Wrapper: subject-sorted batch, lane-padded channels, scalar-prefetch gather
# --------------------------------------------------------------------------- #
def resblock_subject_forward(params, x, y, subj_id, *,
                             n_filters_out, kernel_size, downsample):
    B, Cin, L = x.shape
    Cout, k, s = int(n_filters_out), int(kernel_size), int(downsample)
    assert k % 2 == 1, "kernel_size must be odd (matches the PyTorch module)"
    pad1 = _padding(1, k)
    pad2 = _padding(s, k)
    L_out = (L + 2 * pad2 - k) // s + 1
    if s > 1:
        # PyTorch MaxPool1d truncates; the residual add requires equal lengths.
        assert L // s == L_out, "conv2 / maxpool output length mismatch"
    else:
        assert L_out == L

    has_skip_conv = (Cin != Cout)
    cdt = x.dtype

    LANE = 128
    Cin_p = _round_up(Cin, LANE)
    Cout_p = _round_up(Cout, LANE)
    dcin, dcout = Cin_p - Cin, Cout_p - Cout
    pad_front = _round_up(pad2, 8) if pad2 > 0 else 0

    # ---- subject-id -> row index in the per-subject stacked parameters ----
    subjects = list(params.keys())
    sub_idx = {sid: i for i, sid in enumerate(subjects)}
    ids = list(subj_id) if isinstance(subj_id, (list, tuple)) else [subj_id] * B
    assert len(ids) == B
    sid_np = np.asarray([sub_idx[i] for i in ids], dtype=np.int32)

    # Sort the batch by subject so consecutive grid steps map to the same
    # weight block index (Pallas then skips the weight re-DMA).
    perm = np.argsort(sid_np, kind="stable")
    inv_perm = np.argsort(perm)
    sid_sorted = jnp.asarray(sid_np[perm])
    perm_j = jnp.asarray(perm, dtype=jnp.int32)
    inv_perm_j = jnp.asarray(inv_perm, dtype=jnp.int32)

    def stack(fn):
        return jnp.stack([fn(params[sid]) for sid in subjects], axis=0)

    # conv taps flattened to (k*C_pad, Cout_p); bn1 scale folded into w1.
    w1f = stack(lambda p: jnp.pad(
        jnp.transpose(p['w1'], (0, 2, 1)) * p['bn1_scale'].reshape(1, 1, Cout),
        ((0, 0), (0, dcin), (0, dcout))
    ).reshape(k * Cin_p, Cout_p).astype(cdt))                        # (S, k*Cin_p, Cout_p)
    w2f = stack(lambda p: jnp.pad(
        jnp.transpose(p['w2'], (0, 2, 1)),
        ((0, 0), (0, dcout), (0, dcout))
    ).reshape(k * Cout_p, Cout_p).astype(cdt))                       # (S, k*Cout_p, Cout_p)
    bnp = stack(lambda p: jnp.pad(
        jnp.concatenate([p['bn1_shift'].T, p['bn2_scale'].T, p['bn2_shift'].T], axis=0),
        ((0, 0), (0, dcout))).astype(jnp.float32))                   # (S, 3, Cout_p)
    if has_skip_conv:
        wskipT = stack(lambda p: jnp.pad(p['wskip'].T,
                                         ((0, dcin), (0, dcout))).astype(cdt))

    # Host-side layout plumbing: batch permute, channel pad to lane multiple,
    # conv1 time zero-pad done once, time on sublanes.
    x_s = jnp.take(x, perm_j, axis=0)
    y_s = jnp.take(y, perm_j, axis=0)
    xT = jnp.transpose(jnp.pad(x_s, ((0, 0), (0, dcin), (pad1, pad1))), (0, 2, 1))
    yT = jnp.transpose(jnp.pad(y_s, ((0, 0), (0, dcin), (0, 0))), (0, 2, 1))

    kernel = functools.partial(_resblock_kernel, k=k, s=s, pad2=pad2,
                               pad_front=pad_front, L=L, L_out=L_out,
                               has_skip_conv=has_skip_conv)

    batch_map = lambda b, sid: (b, 0, 0)          # batch-indexed operands
    subj_map = lambda b, sid: (sid[b], 0, 0)      # subject-indexed operands

    in_specs = [
        pl.BlockSpec((None, L + 2 * pad1, Cin_p), batch_map),   # x (padded, (L,C))
        pl.BlockSpec((None, L, Cin_p), batch_map),              # y ((L,C))
        pl.BlockSpec((None, k * Cin_p, Cout_p), subj_map),      # w1 (bn1 scale folded)
        pl.BlockSpec((None, k * Cout_p, Cout_p), subj_map),     # w2
    ]
    operands = [xT, yT, w1f, w2f]
    if has_skip_conv:
        in_specs.append(pl.BlockSpec((None, Cin_p, Cout_p), subj_map))  # 1x1 skip conv
        operands.append(wskipT)
    in_specs.append(pl.BlockSpec((None, 3, Cout_p), subj_map))          # packed BN params
    operands.append(bnp)

    out_specs = (pl.BlockSpec((None, L_out, Cout_p), batch_map),
                 pl.BlockSpec((None, L_out, Cout_p), batch_map))
    out_shape = (jax.ShapeDtypeStruct((B, L_out, Cout_p), cdt),
                 jax.ShapeDtypeStruct((B, L_out, Cout_p), cdt))

    # VMEM footprint estimate: double-buffered operands + outputs + scratch +
    # f32 intermediates.  Raise the scoped limit only when needed (cap 64 MiB).
    bytes_c = np.dtype(cdt).itemsize
    vmem_est = (
        2 * ((L + 2 * pad1) * Cin_p + L * Cin_p
             + k * Cin_p * Cout_p + k * Cout_p * Cout_p
             + (Cin_p * Cout_p if has_skip_conv else 0)
             + 2 * L_out * Cout_p) * bytes_c
        + 2 * 3 * Cout_p * 4
        + (pad_front + L + pad2) * Cout_p * bytes_c
        + 3 * max(L, L_out) * Cout_p * 4)
    cp_kwargs = dict(dimension_semantics=("parallel",))
    if vmem_est > 30 * 1024 * 1024:
        cp_kwargs["vmem_limit_bytes"] = int(min(vmem_est * 5 // 4, 64 * 1024 * 1024))

    grid_spec = pltpu.PrefetchScalarGridSpec(
        num_scalar_prefetch=1,
        grid=(B,),
        in_specs=in_specs,
        out_specs=out_specs,
        scratch_shapes=[pltpu.VMEM((pad_front + L + pad2, Cout_p), cdt)],
    )

    fn = pl.pallas_call(
        kernel,
        grid_spec=grid_spec,
        out_shape=out_shape,
        compiler_params=pltpu.CompilerParams(**cp_kwargs),
    )
    x_out_t, y_out_t = fn(sid_sorted, *operands)

    # Back to the PyTorch NCL layout: drop lane padding, undo the subject sort.
    x_out = jnp.take(jnp.transpose(x_out_t, (0, 2, 1))[:, :Cout, :], inv_perm_j, axis=0)
    y_out = jnp.take(jnp.transpose(y_out_t, (0, 2, 1))[:, :Cout, :], inv_perm_j, axis=0)
    return x_out, y_out


# --------------------------------------------------------------------------- #
# Deterministic parameter init (one ResBlock1d per subject)
# --------------------------------------------------------------------------- #
def init_params(key, subject_ids, Cin, Cout, k, eps=1e-5):
    params = {}
    for sid in subject_ids:
        key, k1, k2, k3, k4, k5 = jax.random.split(key, 6)
        w1 = 0.2 * jax.random.normal(k1, (k, Cout, Cin), jnp.float32)
        w2 = 0.2 * jax.random.normal(k2, (k, Cout, Cout), jnp.float32)
        if Cin != Cout:
            wskip = 0.2 * jax.random.normal(k3, (Cout, Cin), jnp.float32)
        else:
            wskip = jnp.eye(Cout, dtype=jnp.float32)   # unused (identity skip)

        # BatchNorm parameters (inference mode, folded into scale/shift)
        def bn(kg, kb, km, kv):
            gamma = 1.0 + 0.1 * jax.random.normal(kg, (Cout,), jnp.float32)
            beta = 0.1 * jax.random.normal(kb, (Cout,), jnp.float32)
            mean = 0.1 * jax.random.normal(km, (Cout,), jnp.float32)
            var = 1.0 + 0.1 * jnp.abs(jax.random.normal(kv, (Cout,), jnp.float32))
            scale = gamma / jnp.sqrt(var + eps)
            shift = beta - mean * scale
            return scale[:, None], shift[:, None]

        k4a, k4b, k4c, k4d = jax.random.split(k4, 4)
        k5a, k5b, k5c, k5d = jax.random.split(k5, 4)
        bn1_scale, bn1_shift = bn(k4a, k4b, k4c, k4d)
        bn2_scale, bn2_shift = bn(k5a, k5b, k5c, k5d)
        params[sid] = dict(w1=w1, w2=w2, wskip=wskip,
                           bn1_scale=bn1_scale, bn1_shift=bn1_shift,
                           bn2_scale=bn2_scale, bn2_shift=bn2_shift)
    return params


# --------------------------------------------------------------------------- #
# Pure-JAX reference (for correctness checking only)
# --------------------------------------------------------------------------- #
def _ref_resblock(p, x, y, k, s, Cin, Cout):
    pad1 = _padding(1, k)
    pad2 = _padding(s, k)
    dn = ('NCH', 'OIH', 'NCH')
    w1 = jnp.transpose(p['w1'], (1, 2, 0))   # (Cout, Cin, k)
    w2 = jnp.transpose(p['w2'], (1, 2, 0))   # (Cout, Cout, k)
    z = lax.conv_general_dilated(x, w1, (1,), [(pad1, pad1)], dimension_numbers=dn)
    z = jnp.maximum(z * p['bn1_scale'][None] + p['bn1_shift'][None], 0.0)
    z = lax.conv_general_dilated(z, w2, (s,), [(pad2, pad2)], dimension_numbers=dn)
    ys = y
    if s > 1:
        Lp = (y.shape[-1] // s) * s
        ys = y[..., :Lp].reshape(y.shape[0], y.shape[1], Lp // s, s).max(-1)
    if Cin != Cout:
        ys = lax.conv_general_dilated(ys, p['wskip'][..., None], (1,), [(0, 0)],
                                      dimension_numbers=dn)
    x2 = z + ys
    y_out = x2
    x_out = jnp.maximum(x2 * p['bn2_scale'][None] + p['bn2_shift'][None], 0.0)
    return x_out, y_out


def ref_forward(params, x, y, subj_id, *, k, s, Cin, Cout):
    B = x.shape[0]
    ids = list(subj_id) if isinstance(subj_id, (list, tuple)) else [subj_id] * B
    xs, ys = [], []
    for i, sid in enumerate(ids):
        xo, yo = _ref_resblock(params[sid], x[i:i + 1], y[i:i + 1], k, s, Cin, Cout)
        xs.append(xo[0]); ys.append(yo[0])
    return jnp.stack(xs), jnp.stack(ys)


# --------------------------------------------------------------------------- #
if __name__ == "__main__":
    # ---- Config 1: downsample + channel expansion (MaxPool + 1x1 skip) -----
    B, Cin, Cout, L = 2, 4, 8, 16
    kernel_size, downsample = 3, 2          # dropout is identity (eval mode)
    subject_ids = [0, 1, 2]

    params = init_params(jax.random.PRNGKey(0), subject_ids, Cin, Cout, kernel_size)
    kx, ky = jax.random.split(jax.random.PRNGKey(0), 2)
    x = jax.random.normal(kx, (B, Cin, L), jnp.float32)
    y = jax.random.normal(ky, (B, Cin, L), jnp.float32)

    # Case 1a: subj_id is a list (one subject per batch element)
    subj_list = [2, 0]
    x_out, y_out = resblock_subject_forward(
        params, x, y, subj_list,
        n_filters_out=Cout, kernel_size=kernel_size, downsample=downsample)
    # Case 1b: subj_id is a scalar (same subject for the whole batch)
    x_out2, y_out2 = resblock_subject_forward(
        params, x, y, 1,
        n_filters_out=Cout, kernel_size=kernel_size, downsample=downsample)
    jax.block_until_ready((x_out, y_out, x_out2, y_out2))

    xr, yr = ref_forward(params, x, y, subj_list, k=kernel_size, s=downsample,
                         Cin=Cin, Cout=Cout)
    xr2, yr2 = ref_forward(params, x, y, 1, k=kernel_size, s=downsample,
                           Cin=Cin, Cout=Cout)
    np.testing.assert_allclose(np.asarray(x_out), np.asarray(xr), rtol=1e-4, atol=1e-5)
    np.testing.assert_allclose(np.asarray(y_out), np.asarray(yr), rtol=1e-4, atol=1e-5)
    np.testing.assert_allclose(np.asarray(x_out2), np.asarray(xr2), rtol=1e-4, atol=1e-5)
    np.testing.assert_allclose(np.asarray(y_out2), np.asarray(yr2), rtol=1e-4, atol=1e-5)

    # ---- Config 2: no downsample, Cin == Cout (identity skip path) ---------
    params2 = init_params(jax.random.PRNGKey(1), subject_ids, Cout, Cout, kernel_size)
    xb = jax.random.normal(kx, (B, Cout, L), jnp.float32)
    yb = jax.random.normal(ky, (B, Cout, L), jnp.float32)
    x_out3, y_out3 = resblock_subject_forward(
        params2, xb, yb, [0, 2],
        n_filters_out=Cout, kernel_size=kernel_size, downsample=1)
    jax.block_until_ready((x_out3, y_out3))
    xr3, yr3 = ref_forward(params2, xb, yb, [0, 2], k=kernel_size, s=1,
                           Cin=Cout, Cout=Cout)
    np.testing.assert_allclose(np.asarray(x_out3), np.asarray(xr3), rtol=1e-4, atol=1e-5)
    np.testing.assert_allclose(np.asarray(y_out3), np.asarray(yr3), rtol=1e-4, atol=1e-5)

    print("KERNEL_OK")
</pallas_src>

<mosaic_0001>
module attributes {stable_mosaic.version = 11 : i64} {
  func.func @_resblock_kernel(%arg0: i32, %arg1: memref<2xi32, #tpu.memory_space<smem>>, %arg2: memref<1x18x128xf32, #tpu.memory_space<vmem>>, %arg3: memref<1x16x128xf32, #tpu.memory_space<vmem>>, %arg4: memref<1x384x128xf32, #tpu.memory_space<vmem>>, %arg5: memref<1x384x128xf32, #tpu.memory_space<vmem>>, %arg6: memref<1x128x128xf32, #tpu.memory_space<vmem>>, %arg7: memref<1x3x128xf32, #tpu.memory_space<vmem>>, %arg8: memref<1x8x128xf32, #tpu.memory_space<vmem>>, %arg9: memref<1x8x128xf32, #tpu.memory_space<vmem>>, %arg10: memref<25x128xf32, #tpu.memory_space<vmem>>) attributes {dimension_semantics = [#tpu.dimension_semantics<parallel>], iteration_bounds = array<i64: 2>, scalar_prefetch = 1 : i64, scratch_operands = 1 : i64, tpu.core_type = #tpu.core_type<tc>, window_params = [{transform_indices = @transform_0, window_bounds = array<i64: 1, 18, 128>}, {transform_indices = @transform_1, window_bounds = array<i64: 1, 16, 128>}, {transform_indices = @transform_2, window_bounds = array<i64: 1, 384, 128>}, {transform_indices = @transform_3, window_bounds = array<i64: 1, 384, 128>}, {transform_indices = @transform_4, window_bounds = array<i64: 1, 128, 128>}, {transform_indices = @transform_5, window_bounds = array<i64: 1, 3, 128>}, {transform_indices = @transform_6, window_bounds = array<i64: 1, 8, 128>}, {transform_indices = @transform_7, window_bounds = array<i64: 1, 8, 128>}]} {
    %c0 = arith.constant 0 : index
    %c0_0 = arith.constant 0 : index
    %c0_1 = arith.constant 0 : index
    %0 = vector.load %arg7[%c0, %c0_0, %c0_1] : memref<1x3x128xf32, #tpu.memory_space<vmem>>, vector<1x3x128xf32>
    %1 = vector.shape_cast %0 : vector<1x3x128xf32> to vector<3x128xf32>
    %2 = vector.extract_strided_slice %1 {offsets = [0, 0], sizes = [1, 128], strides = [1, 1]} : vector<3x128xf32> to vector<1x128xf32>
    %3 = vector.extract_strided_slice %1 {offsets = [1, 0], sizes = [1, 128], strides = [1, 1]} : vector<3x128xf32> to vector<1x128xf32>
    %4 = vector.extract_strided_slice %1 {offsets = [2, 0], sizes = [1, 128], strides = [1, 1]} : vector<3x128xf32> to vector<1x128xf32>
    %c0_i32 = arith.constant 0 : i32
    %5 = arith.cmpi eq, %arg0, %c0_i32 : i32
    %6 = arith.extui %5 : i1 to i32
    %c0_i32_2 = arith.constant 0 : i32
    %7 = arith.cmpi ne, %6, %c0_i32_2 : i32
    scf.if %7 {
      %cst_54 = arith.constant 0.000000e+00 : f32
      %65 = vector.broadcast %cst_54 : f32 to vector<1x128xf32>
      %c7_55 = arith.constant 7 : index
      %c0_56 = arith.constant 0 : index
      %66 = vector.load %arg10[%c7_55, %c0_56] : memref<25x128xf32, #tpu.memory_space<vmem>>, vector<1x128xf32>
      tpu.vector_store %arg10[%c7_55, %c0_56], %65 {strides = array<i32>} : memref<25x128xf32, #tpu.memory_space<vmem>>, vector<1x128xf32>,
      %c24 = arith.constant 24 : index
      %c0_57 = arith.constant 0 : index
      %67 = vector.load %arg10[%c24, %c0_57] : memref<25x128xf32, #tpu.memory_space<vmem>>, vector<1x128xf32>
      tpu.vector_store %arg10[%c24, %c0_57], %65 {strides = array<i32>} : memref<25x128xf32, #tpu.memory_space<vmem>>, vector<1x128xf32>,
    } else {
    }
    %c0_3 = arith.constant 0 : index
    %c0_4 = arith.constant 0 : index
    %c0_5 = arith.constant 0 : index
    %8 = vector.load %arg2[%c0_3, %c0_4, %c0_5] : memref<1x18x128xf32, #tpu.memory_space<vmem>>, vector<1x16x128xf32>
    %9 = vector.shape_cast %8 : vector<1x16x128xf32> to vector<16x128xf32>
    %c0_6 = arith.constant 0 : index
    %c0_7 = arith.constant 0 : index
    %c0_8 = arith.constant 0 : index
    %10 = vector.load %arg4[%c0_6, %c0_7, %c0_8] : memref<1x384x128xf32, #tpu.memory_space<vmem>>, vector<1x128x128xf32>
    %11 = vector.shape_cast %10 : vector<1x128x128xf32> to vector<128x128xf32>
    %cst = arith.constant dense<0.000000e+00> : vector<16x128xf32>
    %12 = tpu.matmul %9, %11, %cst {dimension_numbers = #tpu.dot_dimension_numbers<[1], [0], [0], [1], [0, 0, 1, 1], [], []>} : vector<16x128xf32>, vector<128x128xf32>, vector<16x128xf32> -> vector<16x128xf32>
    %c0_9 = arith.constant 0 : index
    %c1 = arith.constant 1 : index
    %c0_10 = arith.constant 0 : index
    %13 = vector.load %arg2[%c0_9, %c1, %c0_10] : memref<1x18x128xf32, #tpu.memory_space<vmem>>, vector<1x16x128xf32>
    %14 = vector.shape_cast %13 : vector<1x16x128xf32> to vector<16x128xf32>
    %c0_11 = arith.constant 0 : index
    %c128 = arith.constant 128 : index
    %c0_12 = arith.constant 0 : index
    %15 = vector.load %arg4[%c0_11, %c128, %c0_12] : memref<1x384x128xf32, #tpu.memory_space<vmem>>, vector<1x128x128xf32>
    %16 = vector.shape_cast %15 : vector<1x128x128xf32> to vector<128x128xf32>
    %cst_13 = arith.constant dense<0.000000e+00> : vector<16x128xf32>
    %17 = tpu.matmul %14, %16, %cst_13 {dimension_numbers = #tpu.dot_dimension_numbers<[1], [0], [0], [1], [0, 0, 1, 1], [], []>} : vector<16x128xf32>, vector<128x128xf32>, vector<16x128xf32> -> vector<16x128xf32>
    %18 = arith.addf %12, %17 : vector<16x128xf32>
    %c0_14 = arith.constant 0 : index
    %c2 = arith.constant 2 : index
    %c0_15 = arith.constant 0 : index
    %19 = vector.load %arg2[%c0_14, %c2, %c0_15] : memref<1x18x128xf32, #tpu.memory_space<vmem>>, vector<1x16x128xf32>
    %20 = vector.shape_cast %19 : vector<1x16x128xf32> to vector<16x128xf32>
    %c0_16 = arith.constant 0 : index
    %c256 = arith.constant 256 : index
    %c0_17 = arith.constant 0 : index
    %21 = vector.load %arg4[%c0_16, %c256, %c0_17] : memref<1x384x128xf32, #tpu.memory_space<vmem>>, vector<1x128x128xf32>
    %22 = vector.shape_cast %21 : vector<1x128x128xf32> to vector<128x128xf32>
    %cst_18 = arith.constant dense<0.000000e+00> : vector<16x128xf32>
    %23 = tpu.matmul %20, %22, %cst_18 {dimension_numbers = #tpu.dot_dimension_numbers<[1], [0], [0], [1], [0, 0, 1, 1], [], []>} : vector<16x128xf32>, vector<128x128xf32>, vector<16x128xf32> -> vector<16x128xf32>
    %24 = arith.addf %18, %23 : vector<16x128xf32>
    %25 = vector.broadcast %2 : vector<1x128xf32> to vector<16x128xf32>
    %26 = arith.addf %24, %25 : vector<16x128xf32>
    %cst_19 = arith.constant 0.000000e+00 : f32
    %27 = vector.broadcast %cst_19 : f32 to vector<16x128xf32>
    %28 = arith.maximumf %26, %27 : vector<16x128xf32>
    %c8 = arith.constant 8 : index
    %c0_20 = arith.constant 0 : index
    %29 = vector.load %arg10[%c8, %c0_20] : memref<25x128xf32, #tpu.memory_space<vmem>>, vector<16x128xf32>
    tpu.vector_store %arg10[%c8, %c0_20], %28 {strides = array<i32>} : memref<25x128xf32, #tpu.memory_space<vmem>>, vector<16x128xf32>,
    %c7 = arith.constant 7 : index
    %c0_21 = arith.constant 0 : index
    %30 = tpu.strided_load %arg10[%c7, %c0_21] {strides = array<i32: 2, 1>} : memref<25x128xf32, #tpu.memory_space<vmem>>, vector<8x128xf32>
    %c0_22 = arith.constant 0 : index
    %c0_23 = arith.constant 0 : index
    %c0_24 = arith.constant 0 : index
    %31 = vector.load %arg5[%c0_22, %c0_23, %c0_24] : memref<1x384x128xf32, #tpu.memory_space<vmem>>, vector<1x128x128xf32>
    %32 = vector.shape_cast %31 : vector<1x128x128xf32> to vector<128x128xf32>
    %cst_25 = arith.constant dense<0.000000e+00> : vector<8x128xf32>
    %33 = tpu.matmul %30, %32, %cst_25 {dimension_numbers = #tpu.dot_dimension_numbers<[1], [0], [0], [1], [0, 0, 1, 1], [], []>} : vector<8x128xf32>, vector<128x128xf32>, vector<8x128xf32> -> vector<8x128xf32>
    %c8_26 = arith.constant 8 : index
    %c0_27 = arith.constant 0 : index
    %34 = tpu.strided_load %arg10[%c8_26, %c0_27] {strides = array<i32: 2, 1>} : memref<25x128xf32, #tpu.memory_space<vmem>>, vector<8x128xf32>
    %c0_28 = arith.constant 0 : index
    %c128_29 = arith.constant 128 : index
    %c0_30 = arith.constant 0 : index
    %35 = vector.load %arg5[%c0_28, %c128_29, %c0_30] : memref<1x384x128xf32, #tpu.memory_space<vmem>>, vector<1x128x128xf32>
    %36 = vector.shape_cast %35 : vector<1x128x128xf32> to vector<128x128xf32>
    %cst_31 = arith.constant dense<0.000000e+00> : vector<8x128xf32>
    %37 = tpu.matmul %34, %36, %cst_31 {dimension_numbers = #tpu.dot_dimension_numbers<[1], [0], [0], [1], [0, 0, 1, 1], [], []>} : vector<8x128xf32>, vector<128x128xf32>, vector<8x128xf32> -> vector<8x128xf32>
    %38 = arith.addf %33, %37 : vector<8x128xf32>
    %c9 = arith.constant 9 : index
    %c0_32 = arith.constant 0 : index
    %39 = tpu.strided_load %arg10[%c9, %c0_32] {strides = array<i32: 2, 1>} : memref<25x128xf32, #tpu.memory_space<vmem>>, vector<8x128xf32>
    %c0_33 = arith.constant 0 : index
    %c256_34 = arith.constant 256 : index
    %c0_35 = arith.constant 0 : index
    %40 = vector.load %arg5[%c0_33, %c256_34, %c0_35] : memref<1x384x128xf32, #tpu.memory_space<vmem>>, vector<1x128x128xf32>
    %41 = vector.shape_cast %40 : vector<1x128x128xf32> to vector<128x128xf32>
    %cst_36 = arith.constant dense<0.000000e+00> : vector<8x128xf32>
    %42 = tpu.matmul %39, %41, %cst_36 {dimension_numbers = #tpu.dot_dimension_numbers<[1], [0], [0], [1], [0, 0, 1, 1], [], []>} : vector<8x128xf32>, vector<128x128xf32>, vector<8x128xf32> -> vector<8x128xf32>
    %43 = arith.addf %38, %42 : vector<8x128xf32>
    %c0_37 = arith.constant 0 : index
    %c0_38 = arith.constant 0 : index
    %c0_39 = arith.constant 0 : index
    %44 = tpu.strided_load %arg3[%c0_37, %c0_38, %c0_39] {strides = array<i32: 1, 2, 1>} : memref<1x16x128xf32, #tpu.memory_space<vmem>>, vector<1x8x128xf32>
    %45 = vector.shape_cast %44 : vector<1x8x128xf32> to vector<8x128xf32>
    %c0_40 = arith.constant 0 : index
    %c1_41 = arith.constant 1 : index
    %c0_42 = arith.constant 0 : index
    %46 = tpu.strided_load %arg3[%c0_40, %c1_41, %c0_42] {strides = array<i32: 1, 2, 1>} : memref<1x16x128xf32, #tpu.memory_space<vmem>>, vector<1x8x128xf32>
    %47 = vector.shape_cast %46 : vector<1x8x128xf32> to vector<8x128xf32>
    %48 = arith.maximumf %45, %47 : vector<8x128xf32>
    %c0_43 = arith.constant 0 : index
    %c0_44 = arith.constant 0 : index
    %c0_45 = arith.constant 0 : index
    %49 = vector.load %arg6[%c0_43, %c0_44, %c0_45] : memref<1x128x128xf32, #tpu.memory_space<vmem>>, vector<1x128x128xf32>
    %50 = vector.shape_cast %49 : vector<1x128x128xf32> to vector<128x128xf32>
    %cst_46 = arith.constant dense<0.000000e+00> : vector<8x128xf32>
    %51 = tpu.matmul %48, %50, %cst_46 {dimension_numbers = #tpu.dot_dimension_numbers<[1], [0], [0], [1], [0, 0, 1, 1], [], []>} : vector<8x128xf32>, vector<128x128xf32>, vector<8x128xf32> -> vector<8x128xf32>
    %52 = arith.addf %43, %51 : vector<8x128xf32>
    %c0_47 = arith.constant 0 : index
    %c0_48 = arith.constant 0 : index
    %c0_49 = arith.constant 0 : index
    %53 = vector.load %arg9[%c0_47, %c0_48, %c0_49] : memref<1x8x128xf32, #tpu.memory_space<vmem>>, vector<1x8x128xf32>
    %54 = vector.shape_cast %53 : vector<1x8x128xf32> to vector<8x128xf32>
    %55 = vector.shape_cast %52 : vector<8x128xf32> to vector<1x8x128xf32>
    tpu.vector_store %arg9[%c0_47, %c0_48, %c0_49], %55 {strides = array<i32>} : memref<1x8x128xf32, #tpu.memory_space<vmem>>, vector<1x8x128xf32>,
    %56 = vector.broadcast %3 : vector<1x128xf32> to vector<8x128xf32>
    %57 = arith.mulf %52, %56 : vector<8x128xf32>
    %58 = vector.broadcast %4 : vector<1x128xf32> to vector<8x128xf32>
    %59 = arith.addf %57, %58 : vector<8x128xf32>
    %cst_50 = arith.constant 0.000000e+00 : f32
    %60 = vector.broadcast %cst_50 : f32 to vector<8x128xf32>
    %61 = arith.maximumf %59, %60 : vector<8x128xf32>
    %c0_51 = arith.constant 0 : index
    %c0_52 = arith.constant 0 : index
    %c0_53 = arith.constant 0 : index
    %62 = vector.load %arg8[%c0_51, %c0_52, %c0_53] : memref<1x8x128xf32, #tpu.memory_space<vmem>>, vector<1x8x128xf32>
    %63 = vector.shape_cast %62 : vector<1x8x128xf32> to vector<8x128xf32>
    %64 = vector.shape_cast %61 : vector<8x128xf32> to vector<1x8x128xf32>
    tpu.vector_store %arg8[%c0_51, %c0_52, %c0_53], %64 {strides = array<i32>} : memref<1x8x128xf32, #tpu.memory_space<vmem>>, vector<1x8x128xf32>,
    return
  }
  func.func @transform_0(%arg0: i32, %arg1: memref<2xi32, #tpu.memory_space<smem>>) -> (i32, i32, i32) {
    %c0_i32 = arith.constant 0 : i32
    %c0_i32_0 = arith.constant 0 : i32
    %c0_i32_1 = arith.constant 0 : i32
    return %arg0, %c0_i32, %c0_i32_0 : i32, i32, i32
  }
  func.func @transform_1(%arg0: i32, %arg1: memref<2xi32, #tpu.memory_space<smem>>) -> (i32, i32, i32) {
    %c0_i32 = arith.constant 0 : i32
    %c0_i32_0 = arith.constant 0 : i32
    %c0_i32_1 = arith.constant 0 : i32
    return %arg0, %c0_i32, %c0_i32_0 : i32, i32, i32
  }
  func.func @transform_2(%arg0: i32, %arg1: memref<2xi32, #tpu.memory_space<smem>>) -> (i32, i32, i32) {
    %0 = arith.index_cast %arg0 : i32 to index
    %1 = memref.load %arg1[%0] : memref<2xi32, #tpu.memory_space<smem>>
    %c0_i32 = arith.constant 0 : i32
    %c0_i32_0 = arith.constant 0 : i32
    %c0_i32_1 = arith.constant 0 : i32
    return %1, %c0_i32, %c0_i32_0 : i32, i32, i32
  }
  func.func @transform_3(%arg0: i32, %arg1: memref<2xi32, #tpu.memory_space<smem>>) -> (i32, i32, i32) {
    %0 = arith.index_cast %arg0 : i32 to index
    %1 = memref.load %arg1[%0] : memref<2xi32, #tpu.memory_space<smem>>
    %c0_i32 = arith.constant 0 : i32
    %c0_i32_0 = arith.constant 0 : i32
    %c0_i32_1 = arith.constant 0 : i32
    return %1, %c0_i32, %c0_i32_0 : i32, i32, i32
  }
  func.func @transform_4(%arg0: i32, %arg1: memref<2xi32, #tpu.memory_space<smem>>) -> (i32, i32, i32) {
    %0 = arith.index_cast %arg0 : i32 to index
    %1 = memref.load %arg1[%0] : memref<2xi32, #tpu.memory_space<smem>>
    %c0_i32 = arith.constant 0 : i32
    %c0_i32_0 = arith.constant 0 : i32
    %c0_i32_1 = arith.constant 0 : i32
    return %1, %c0_i32, %c0_i32_0 : i32, i32, i32
  }
  func.func @transform_5(%arg0: i32, %arg1: memref<2xi32, #tpu.memory_space<smem>>) -> (i32, i32, i32) {
    %0 = arith.index_cast %arg0 : i32 to index
    %1 = memref.load %arg1[%0] : memref<2xi32, #tpu.memory_space<smem>>
    %c0_i32 = arith.constant 0 : i32
    %c0_i32_0 = arith.constant 0 : i32
    %c0_i32_1 = arith.constant 0 : i32
    return %1, %c0_i32, %c0_i32_0 : i32, i32, i32
  }
  func.func @transform_6(%arg0: i32, %arg1: memref<2xi32, #tpu.memory_space<smem>>) -> (i32, i32, i32) {
    %c0_i32 = arith.constant 0 : i32
    %c0_i32_0 = arith.constant 0 : i32
    %c0_i32_1 = arith.constant 0 : i32
    return %arg0, %c0_i32, %c0_i32_0 : i32, i32, i32
  }
  func.func @transform_7(%arg0: i32, %arg1: memref<2xi32, #tpu.memory_space<smem>>) -> (i32, i32, i32) {
    %c0_i32 = arith.constant 0 : i32
    %c0_i32_0 = arith.constant 0 : i32
    %c0_i32_1 = arith.constant 0 : i32
    return %arg0, %c0_i32, %c0_i32_0 : i32, i32, i32
  }
}

</mosaic_0001>

<llo_original>
// kernel: tpu_custom_call.1
$region0: #{tpu_custom_call.1}
  #allocation0 [shape = 'u32[]', space=smem, size = 0x4, offset = 0x4, fixed_abs, tag = 'smem constant byte address 0x4 - core index']
  #allocation1 [shape = 'u32[144,128]{1,0:T(1,128)}', space=vmem, size = 0x12000, scoped, tag = 'internal scratch']
  #allocation2 [shape = 'f32[25,128]{1,0:T(8,128)}', space=vmem, size = 0x4000, scoped, tag = 'scratch operand']
  #allocation3 [shape = 's32[1]{0}', space=sflag, size = 0x4, scoped, tag = 'scoped memory for tpu_custom_call.1']
  #allocation4 [shape = 'u8[512]{0}', space=smem, size = 0x200, scoped, tag = 'prefetched SMEM operand 0']
  %s0 = inlined_call_operand.vmem [shape: s32[2], index: 0, kind: input, shape index: {}]
  %s1 = inlined_call_operand.vmem [shape: f32[2,18,128], index: 1, kind: input, shape index: {}]
  %s2 = inlined_call_operand.vmem [shape: f32[2,16,128], index: 2, kind: input, shape index: {}]
  %s3 = inlined_call_operand.hbm [shape: f32[3,384,128], index: 3, kind: input, shape index: {}]
  %s4 = inlined_call_operand.hbm [shape: f32[3,384,128], index: 4, kind: input, shape index: {}]
  %s5 = inlined_call_operand.hbm [shape: f32[3,128,128], index: 5, kind: input, shape index: {}]
  %s6 = inlined_call_operand.vmem [shape: f32[3,3,128], index: 6, kind: input, shape index: {}]
  %s7 = inlined_call_operand.hbm [shape: f32[2,8,128], index: 7, kind: output, shape index: {0}]
  %s8 = inlined_call_operand.hbm [shape: f32[2,8,128], index: 8, kind: output, shape index: {1}]
  %9 = xla_tuple %s7, %s8
  %s10 = sld [smem:[#allocation0]]
  $region81: #{tpu_custom_call.1} parent=0
    _
  %s12 = ssub.s32 1, %s10
  %s13 = scalar_select 0, %s12, %s10
  %s14 = sshll.u32 %s0, 4
  %s15 = int_to_ptr.vmem [resolvable:$true] %s14
  %17 = dma.vmem_to_smem %s15, 16, [#allocation4], [#allocation3]
  %18 = dma.done [#allocation3], 16
  %19 = sfence
  $region1: #{tpu_custom_call.1} parent=0
    #allocation5 [shape = 'u8[393216]{0}', space=vmem, size = 0x60000, scoped, tag = 'input window, operand 3']
    #allocation6 [shape = 's32[2]{0}', space=sflag, size = 0x8, scoped, tag = 'scoped memory for tpu_custom_call.1']
    #allocation7 [shape = 's32[2]{0}', space=sflag, size = 0x8, scoped, tag = 'scoped memory for tpu_custom_call.1']
    #allocation8 [shape = 'u8[393216]{0}', space=vmem, size = 0x60000, scoped, tag = 'input window, operand 4']
    #allocation9 [shape = 's32[2]{0}', space=sflag, size = 0x8, scoped, tag = 'scoped memory for tpu_custom_call.1']
    #allocation10 [shape = 'u8[131072]{0}', space=vmem, size = 0x20000, scoped, tag = 'input window, operand 5']
    #allocation11 [shape = 'u8[8192]{0}', space=vmem, size = 0x2000, scoped, tag = 'output window, operand 0']
    #allocation12 [shape = 'u8[8192]{0}', space=vmem, size = 0x2000, scoped, tag = 'output window, operand 1']
    #allocation13 [shape = 's32[2]{0}', space=sflag, size = 0x8, scoped, tag = 'scoped memory for tpu_custom_call.1']
    %20 = vsyncpa [#allocation6], 0
    %s21 = scalar_lea.sflag [#allocation6], 1
    %22 = vsyncpa %s21, 0
    %23 = vsyncpa [#allocation9], 0
    %s24 = scalar_lea.sflag [#allocation9], 1
    %25 = vsyncpa %s24, 0
    %26 = vsyncpa [#allocation7], 0
    %s27 = scalar_lea.sflag [#allocation7], 1
    %28 = vsyncpa %s27, 0
    %29 = vsyncpa [#allocation13], 0
    %s30 = scalar_lea.sflag [#allocation13], 1
    %31 = vsyncpa %s30, 0
    loop: start=0, step=1, limit=4
    $region2: #{tpu_custom_call.1} parent=1 // loop_pre_header
      _
    $region3: #{tpu_custom_call.1} parent=1 // loop_header
      %s33 = sphi 0, %s37
      %p34 = scmp.ge.s32.totalorder %s33, 4
      %s43 = sphi 0, %s45
      %s46 = sphi 0, %s43
      %s47 = sphi 0, %s46
      %s63 = sphi 0, %s47
      %s69 = sphi 0, %s71
      %s72 = sphi 0, %s69
      %s73 = sphi 0, %s72
      %s89 = sphi 0, %s73
      %s97 = sphi 0, %s99
      %s100 = sphi 0, %s97
      %s101 = sphi 0, %s100
      %s117 = sphi 0, %s101
      %s125 = sphi 0, %s127
      %s128 = sphi 0, %s125
      %s129 = sphi 0, %s128
      %s145 = sphi 0, %s129
      %s153 = sphi 0, %s155
      %s156 = sphi 0, %s153
      %s157 = sphi 0, %s156
      %s173 = sphi 0, %s157
      %s181 = sphi 0, %s183
      %s184 = sphi 0, %s181
      %s185 = sphi 0, %s184
      %s201 = sphi 0, %s185
      %s207 = sphi 0, %s209
      %s210 = sphi 0, %s207
      %s211 = sphi 0, %s210
      %s227 = sphi 0, %s211
      %s233 = sphi 0, %s235
      %s236 = sphi 0, %s233
      %s237 = sphi 0, %s236
      %s253 = sphi 0, %s237
    $region4: #{tpu_custom_call.1} parent=1 // loop_header_branch
      %36 = sbr.rel (%p34) target = $region8
    $region5: #{tpu_custom_call.1} parent=1 // loop_body
      %s38 = ssub.s32 %s33, 1
      %s39 = ssub.s32 %s33, 2
      %s40 = sadd.s32 %s33, 1
      %s41 = ssub.s32 %s33, %s40
      %p42 = scmp.eq.s32.totalorder %s41, 0
      %s44 = sadd.s32 %s43, 1
      %s45 = scalar_select %p42, %s43, %s44
      %p48 = pneg %p42
      %p49 = scmp.eq.s32.totalorder %s33, 1
      %p50 = por %p48, %p49
      %p51 = scmp.ne.s32.totalorder %s43, %s46
      %p52 = scmp.eq.s32.totalorder %s33, 0
      %p53 = por %p51, %p52
      %p54 = scmp.ne.s32.totalorder %s43, %s46
      %p55 = scmp.eq.s32.totalorder %s38, 1
      %p56 = por %p54, %p55
      %p57 = scmp.ne.s32.totalorder %s46, %s47
      %p58 = scmp.eq.s32.totalorder %s38, 0
      %p59 = por %p57, %p58
      %p60 = scmp.ne.s32.totalorder %s46, %s47
      %p61 = scmp.eq.s32.totalorder %s39, 1
      %p62 = por %p60, %p61
      %p64 = scmp.ne.s32.totalorder %s47, %s63
      %p65 = scmp.eq.s32.totalorder %s39, 0
      %p66 = por %p64, %p65
      %s67 = ssub.s32 %s33, %s40
      %p68 = scmp.eq.s32.totalorder %s67, 0
      %s70 = sadd.s32 %s69, 1
      %s71 = scalar_select %p68, %s69, %s70
      %p74 = pneg %p68
      %p75 = scmp.eq.s32.totalorder %s33, 1
      %p76 = por %p74, %p75
      %p77 = scmp.ne.s32.totalorder %s69, %s72
      %p78 = scmp.eq.s32.totalorder %s33, 0
      %p79 = por %p77, %p78
      %p80 = scmp.ne.s32.totalorder %s69, %s72
      %p81 = scmp.eq.s32.totalorder %s38, 1
      %p82 = por %p80, %p81
      %p83 = scmp.ne.s32.totalorder %s72, %s73
      %p84 = scmp.eq.s32.totalorder %s38, 0
      %p85 = por %p83, %p84
      %p86 = scmp.ne.s32.totalorder %s72, %s73
      %p87 = scmp.eq.s32.totalorder %s39, 1
      %p88 = por %p86, %p87
      %p90 = scmp.ne.s32.totalorder %s73, %s89
      %p91 = scmp.eq.s32.totalorder %s39, 0
      %p92 = por %p90, %p91
      %s93 = sld [smem:[#allocation4 + %s33]]
      %s94 = sld [smem:[#allocation4 + %s40]]
      %s95 = ssub.s32 %s93, %s94
      %p96 = scmp.eq.s32.totalorder %s95, 0
      %s98 = sadd.s32 %s97, 1
      %s99 = scalar_select %p96, %s97, %s98
      %p102 = pneg %p96
      %p103 = scmp.eq.s32.totalorder %s33, 1
      %p104 = por %p102, %p103
      %p105 = scmp.ne.s32.totalorder %s97, %s100
      %p106 = scmp.eq.s32.totalorder %s33, 0
      %p107 = por %p105, %p106
      %p108 = scmp.ne.s32.totalorder %s97, %s100
      %p109 = scmp.eq.s32.totalorder %s38, 1
      %p110 = por %p108, %p109
      %p111 = scmp.ne.s32.totalorder %s100, %s101
      %p112 = scmp.eq.s32.totalorder %s38, 0
      %p113 = por %p111, %p112
      %p114 = scmp.ne.s32.totalorder %s100, %s101
      %p115 = scmp.eq.s32.totalorder %s39, 1
      %p116 = por %p114, %p115
      %p118 = scmp.ne.s32.totalorder %s101, %s117
      %p119 = scmp.eq.s32.totalorder %s39, 0
      %p120 = por %p118, %p119
      %s121 = sld [smem:[#allocation4 + %s33]]
      %s122 = sld [smem:[#allocation4 + %s40]]
      %s123 = ssub.s32 %s121, %s122
      %p124 = scmp.eq.s32.totalorder %s123, 0
      %s126 = sadd.s32 %s125, 1
      %s127 = scalar_select %p124, %s125, %s126
      %p130 = pneg %p124
      %p131 = scmp.eq.s32.totalorder %s33, 1
      %p132 = por %p130, %p131
      %p133 = scmp.ne.s32.totalorder %s125, %s128
      %p134 = scmp.eq.s32.totalorder %s33, 0
      %p135 = por %p133, %p134
      %p136 = scmp.ne.s32.totalorder %s125, %s128
      %p137 = scmp.eq.s32.totalorder %s38, 1
      %p138 = por %p136, %p137
      %p139 = scmp.ne.s32.totalorder %s128, %s129
      %p140 = scmp.eq.s32.totalorder %s38, 0
      %p141 = por %p139, %p140
      %p142 = scmp.ne.s32.totalorder %s128, %s129
      %p143 = scmp.eq.s32.totalorder %s39, 1
      %p144 = por %p142, %p143
      %p146 = scmp.ne.s32.totalorder %s129, %s145
      %p147 = scmp.eq.s32.totalorder %s39, 0
      %p148 = por %p146, %p147
      %s149 = sld [smem:[#allocation4 + %s33]]
      %s150 = sld [smem:[#allocation4 + %s40]]
      %s151 = ssub.s32 %s149, %s150
      %p152 = scmp.eq.s32.totalorder %s151, 0
      %s154 = sadd.s32 %s153, 1
      %s155 = scalar_select %p152, %s153, %s154
      %p158 = pneg %p152
      %p159 = scmp.eq.s32.totalorder %s33, 1
      %p160 = por %p158, %p159
      %p161 = scmp.ne.s32.totalorder %s153, %s156
      %p162 = scmp.eq.s32.totalorder %s33, 0
      %p163 = por %p161, %p162
      %p164 = scmp.ne.s32.totalorder %s153, %s156
      %p165 = scmp.eq.s32.totalorder %s38, 1
      %p166 = por %p164, %p165
      %p167 = scmp.ne.s32.totalorder %s156, %s157
      %p168 = scmp.eq.s32.totalorder %s38, 0
      %p169 = por %p167, %p168
      %p170 = scmp.ne.s32.totalorder %s156, %s157
      %p171 = scmp.eq.s32.totalorder %s39, 1
      %p172 = por %p170, %p171
      %p174 = scmp.ne.s32.totalorder %s157, %s173
      %p175 = scmp.eq.s32.totalorder %s39, 0
      %p176 = por %p174, %p175
      %s177 = sld [smem:[#allocation4 + %s33]]
      %s178 = sld [smem:[#allocation4 + %s40]]
      %s179 = ssub.s32 %s177, %s178
      %p180 = scmp.eq.s32.totalorder %s179, 0
      %s182 = sadd.s32 %s181, 1
      %s183 = scalar_select %p180, %s181, %s182
      %p186 = pneg %p180
      %p187 = scmp.eq.s32.totalorder %s33, 1
      %p188 = por %p186, %p187
      %p189 = scmp.ne.s32.totalorder %s181, %s184
      %p190 = scmp.eq.s32.totalorder %s33, 0
      %p191 = por %p189, %p190
      %p192 = scmp.ne.s32.totalorder %s181, %s184
      %p193 = scmp.eq.s32.totalorder %s38, 1
      %p194 = por %p192, %p193
      %p195 = scmp.ne.s32.totalorder %s184, %s185
      %p196 = scmp.eq.s32.totalorder %s38, 0
      %p197 = por %p195, %p196
      %p198 = scmp.ne.s32.totalorder %s184, %s185
      %p199 = scmp.eq.s32.totalorder %s39, 1
      %p200 = por %p198, %p199
      %p202 = scmp.ne.s32.totalorder %s185, %s201
      %p203 = scmp.eq.s32.totalorder %s39, 0
      %p204 = por %p202, %p203
      %s205 = ssub.s32 %s33, %s40
      %p206 = scmp.eq.s32.totalorder %s205, 0
      %s208 = sadd.s32 %s207, 1
      %s209 = scalar_select %p206, %s207, %s208
      %p212 = pneg %p206
      %p213 = scmp.eq.s32.totalorder %s33, 1
      %p214 = por %p212, %p213
      %p215 = scmp.ne.s32.totalorder %s207, %s210
      %p216 = scmp.eq.s32.totalorder %s33, 0
      %p217 = por %p215, %p216
      %p218 = scmp.ne.s32.totalorder %s207, %s210
      %p219 = scmp.eq.s32.totalorder %s38, 1
      %p220 = por %p218, %p219
      %p221 = scmp.ne.s32.totalorder %s210, %s211
      %p222 = scmp.eq.s32.totalorder %s38, 0
      %p223 = por %p221, %p222
      %p224 = scmp.ne.s32.totalorder %s210, %s211
      %p225 = scmp.eq.s32.totalorder %s39, 1
      %p226 = por %p224, %p225
      %p228 = scmp.ne.s32.totalorder %s211, %s227
      %p229 = scmp.eq.s32.totalorder %s39, 0
      %p230 = por %p228, %p229
      %s231 = ssub.s32 %s33, %s40
      %p232 = scmp.eq.s32.totalorder %s231, 0
      %s234 = sadd.s32 %s233, 1
      %s235 = scalar_select %p232, %s233, %s234
      %p238 = pneg %p232
      %p239 = scmp.eq.s32.totalorder %s33, 1
      %p240 = por %p238, %p239
      %p241 = scmp.ne.s32.totalorder %s233, %s236
      %p242 = scmp.eq.s32.totalorder %s33, 0
      %p243 = por %p241, %p242
      %p244 = scmp.ne.s32.totalorder %s233, %s236
      %p245 = scmp.eq.s32.totalorder %s38, 1
      %p246 = por %p244, %p245
      %p247 = scmp.ne.s32.totalorder %s236, %s237
      %p248 = scmp.eq.s32.totalorder %s38, 0
      %p249 = por %p247, %p248
      %p250 = scmp.ne.s32.totalorder %s236, %s237
      %p251 = scmp.eq.s32.totalorder %s39, 1
      %p252 = por %p250, %p251
      %p254 = scmp.ne.s32.totalorder %s237, %s253
      %p255 = scmp.eq.s32.totalorder %s39, 0
      %p256 = por %p254, %p255
      %p257 = scmp.le.s32.totalorder 1, %s33
      %p258 = scmp.lt.s32.totalorder %s33, 3
      %p259 = pnand %p257, %p258
      %p260 = pneg %p259
      // Predicated region
      $region9: #{tpu_custom_call.1} parent=5 // pred_check
        _
      $region10: #{tpu_custom_call.1} parent=5 // pred_check_branch
        %262 = sbr.rel (%p259) target = $region12
      $region11: #{tpu_custom_call.1} parent=5 // pred_region
        %s263 = ssub.s32 %s33, 1
      $region12: #{tpu_custom_call.1} parent=5 // pred_fallthru
        _
      %p264 = scmp.lt.s32.totalorder %s33, 2
      // Predicated region
      $region13: #{tpu_custom_call.1} parent=5 // pred_check
        %p265 = pneg %p264
      $region14: #{tpu_custom_call.1} parent=5 // pred_check_branch
        %267 = sbr.rel (%p265) target = $region16
      $region15: #{tpu_custom_call.1} parent=5 // pred_region
        // Predicated region
        $region17: #{tpu_custom_call.1} parent=15 // pred_check
          %p268 = pneg %p53
        $region18: #{tpu_custom_call.1} parent=15 // pred_check_branch
          %270 = sbr.rel (%p268) target = $region20
        $region19: #{tpu_custom_call.1} parent=15 // pred_region
          %p271 = scmp.lt.s32.totalorder %s33, 1
          %s272 = scalar_select %p271, %s33, 1
          %s273 = smul.addr %s272, 3
          %s274 = smul.addr %s273, 8
          %s275 = scalar_lea.vmem %s1, %s274
        $region20: #{tpu_custom_call.1} parent=15 // pred_fallthru
          _
        // Predicated region
        $region21: #{tpu_custom_call.1} parent=15 // pred_check
          %p276 = pneg %p79
        $region22: #{tpu_custom_call.1} parent=15 // pred_check_branch
          %278 = sbr.rel (%p276) target = $region24
        $region23: #{tpu_custom_call.1} parent=15 // pred_region
          %p279 = scmp.lt.s32.totalorder %s33, 1
          %s280 = scalar_select %p279, %s33, 1
          %s281 = smul.addr %s280, 2
          %s282 = smul.addr %s281, 8
          %s283 = scalar_lea.vmem %s2, %s282
        $region24: #{tpu_custom_call.1} parent=15 // pred_fallthru
          _
        // Predicated region
        $region25: #{tpu_custom_call.1} parent=15 // pred_check
          %p284 = pneg %p107
        $region26: #{tpu_custom_call.1} parent=15 // pred_check_branch
          %286 = sbr.rel (%p284) target = $region28
        $region27: #{tpu_custom_call.1} parent=15 // pred_region
          %s287 = sand.u32 %s97, 1
          %s288 = scalar_lea.sflag [#allocation6], %s287
          %s289 = sand.u32 %s97, 1
          %s290 = smul.addr %s289, 384
          %s291 = scalar_lea.vmem [#allocation5], %s290
          %s292 = sld [smem:[#allocation4 + %s33]]
          %s294 = ssub.s32 6144, 6144
          %295 = vsyncadd %s288, %s294
          %s296 = smul.addr %s292, 48
          %s297 = smul.addr %s296, 128
          %s298 = scalar_lea.hbm %s3, %s297
          %s299 = sshll.u32 %s291, 4
          %s300 = int_to_ptr.vmem [resolvable:$true] %s299
          %305 = dma.hbm_to_vmem [thread:$0]  %s298, 6144, %s300, %s288, 128, 128, 8
        $region28: #{tpu_custom_call.1} parent=15 // pred_fallthru
          _
        // Predicated region
        $region29: #{tpu_custom_call.1} parent=15 // pred_check
          %p306 = pneg %p135
        $region30: #{tpu_custom_call.1} parent=15 // pred_check_branch
          %308 = sbr.rel (%p306) target = $region32
        $region31: #{tpu_custom_call.1} parent=15 // pred_region
          %s309 = sand.u32 %s33, 1
          %s310 = scalar_lea.sflag [#allocation9], %s309
          %s311 = sand.u32 %s125, 1
          %s312 = smul.addr %s311, 384
          %s313 = scalar_lea.vmem [#allocation8], %s312
          %s314 = sld [smem:[#allocation4 + %s33]]
          %s316 = ssub.s32 6144, 6144
          %317 = vsyncadd %s310, %s316
          %s318 = smul.addr %s314, 48
          %s319 = smul.addr %s318, 128
          %s320 = scalar_lea.hbm %s4, %s319
          %s321 = sshll.u32 %s313, 4
          %s322 = int_to_ptr.vmem [resolvable:$true] %s321
          %327 = dma.hbm_to_vmem [thread:$0]  %s320, 6144, %s322, %s310, 128, 128, 8
        $region32: #{tpu_custom_call.1} parent=15 // pred_fallthru
          _
        // Predicated region
        $region33: #{tpu_custom_call.1} parent=15 // pred_check
          %p328 = pneg %p163
        $region34: #{tpu_custom_call.1} parent=15 // pred_check_branch
          %330 = sbr.rel (%p328) target = $region36
        $region35: #{tpu_custom_call.1} parent=15 // pred_region
          %s331 = sand.u32 %s33, 1
          %s332 = scalar_lea.sflag [#allocation9], %s331
          %s333 = sand.u32 %s153, 1
          %s334 = smul.addr %s333, 128
          %s335 = scalar_lea.vmem [#allocation10], %s334
          %s336 = sld [smem:[#allocation4 + %s33]]
          %s338 = ssub.s32 2048, 2048
          %339 = vsyncadd %s332, %s338
          %s340 = smul.addr %s336, 16
          %s341 = smul.addr %s340, 128
          %s342 = scalar_lea.hbm %s5, %s341
          %s343 = sshll.u32 %s335, 4
          %s344 = int_to_ptr.vmem [resolvable:$true] %s343
          %349 = dma.hbm_to_vmem [thread:$0]  %s342, 2048, %s344, %s332, 128, 128, 8
        $region36: #{tpu_custom_call.1} parent=15 // pred_fallthru
          _
        // Predicated region
        $region37: #{tpu_custom_call.1} parent=15 // pred_check
          %p350 = pneg %p191
        $region38: #{tpu_custom_call.1} parent=15 // pred_check_branch
          %352 = sbr.rel (%p350) target = $region40
        $region39: #{tpu_custom_call.1} parent=15 // pred_region
          %s353 = sld [smem:[#allocation4 + %s33]]
          %p354 = scmp.lt.s32.totalorder %s353, 2
          %s355 = scalar_select %p354, %s353, 2
          %s356 = smul.addr %s355, 4
          %s357 = scalar_lea.vmem %s6, %s356
          %s358 = sld [smem:[#allocation4 + %s33]]
        $region40: #{tpu_custom_call.1} parent=15 // pred_fallthru
          _
      $region16: #{tpu_custom_call.1} parent=5 // pred_fallthru
        _
      %p359 = scmp.le.s32.totalorder 1, %s33
      %p360 = scmp.lt.s32.totalorder %s33, 3
      %p361 = pnand %p359, %p360
      %p362 = pneg %p361
      // Predicated region
      $region41: #{tpu_custom_call.1} parent=5 // pred_check
        _
      $region42: #{tpu_custom_call.1} parent=5 // pred_check_branch
        %364 = sbr.rel (%p361) target = $region44
      $region43: #{tpu_custom_call.1} parent=5 // pred_region
        %s365 = ssub.s32 %s33, 1
        %s366 = sand.u32 %s100, 1
        %s367 = scalar_lea.sflag [#allocation6], %s366
        %s368 = sand.u32 %s100, 1
        %s369 = smul.addr %s368, 384
        %s370 = scalar_lea.vmem [#allocation5], %s369
        // Predicated region
        $region45: #{tpu_custom_call.1} parent=43 // pred_check
          %p371 = pneg %p113
        $region46: #{tpu_custom_call.1} parent=43 // pred_check_branch
          %373 = sbr.rel (%p371) target = $region48
        $region47: #{tpu_custom_call.1} parent=43 // pred_region
          %374 = dma.done %s367, 6144
        $region48: #{tpu_custom_call.1} parent=43 // pred_fallthru
          _
        %s375 = sand.u32 %s38, 1
        %s376 = scalar_lea.sflag [#allocation9], %s375
        %s377 = sand.u32 %s128, 1
        %s378 = smul.addr %s377, 384
        %s379 = scalar_lea.vmem [#allocation8], %s378
        // Predicated region
        $region49: #{tpu_custom_call.1} parent=43 // pred_check
          %p380 = pneg %p141
        $region50: #{tpu_custom_call.1} parent=43 // pred_check_branch
          %382 = sbr.rel (%p380) target = $region52
        $region51: #{tpu_custom_call.1} parent=43 // pred_region
          %383 = dma.done %s376, 6144
        $region52: #{tpu_custom_call.1} parent=43 // pred_fallthru
          _
        %s384 = sand.u32 %s38, 1
        %s385 = scalar_lea.sflag [#allocation9], %s384
        %s386 = sand.u32 %s156, 1
        %s387 = smul.addr %s386, 128
        %s388 = scalar_lea.vmem [#allocation10], %s387
        // Predicated region
        $region53: #{tpu_custom_call.1} parent=43 // pred_check
          %p389 = pneg %p169
        $region54: #{tpu_custom_call.1} parent=43 // pred_check_branch
          %391 = sbr.rel (%p389) target = $region56
        $region55: #{tpu_custom_call.1} parent=43 // pred_region
          %392 = dma.done %s385, 2048
        $region56: #{tpu_custom_call.1} parent=43 // pred_fallthru
          _
        %p393 = scmp.lt.s32.totalorder %s38, 1
        %s394 = scalar_select %p393, %s38, 1
        %s395 = smul.addr %s394, 3
        %s396 = smul.addr %s395, 8
        %s397 = scalar_lea.vmem %s1, %s396
        %p398 = pneg %p59
        %p399 = pneg %p56
        %p400 = scmp.lt.s32.totalorder %s38, 1
        %s401 = scalar_select %p400, %s38, 1
        %s402 = smul.addr %s401, 2
        %s403 = smul.addr %s402, 8
        %s404 = scalar_lea.vmem %s2, %s403
        %p405 = pneg %p85
        %p406 = pneg %p82
        %s407 = sand.u32 %s100, 1
        %s408 = scalar_lea.sflag [#allocation6], %s407
        %s409 = sand.u32 %s100, 1
        %s410 = smul.addr %s409, 384
        %s411 = scalar_lea.vmem [#allocation5], %s410
        %p412 = pneg %p113
        %p413 = pneg %p110
        %s414 = sand.u32 %s38, 1
        %s415 = scalar_lea.sflag [#allocation9], %s414
        %s416 = sand.u32 %s128, 1
        %s417 = smul.addr %s416, 384
        %s418 = scalar_lea.vmem [#allocation8], %s417
        %p419 = pneg %p141
        %p420 = pneg %p138
        %s421 = sand.u32 %s38, 1
        %s422 = scalar_lea.sflag [#allocation9], %s421
        %s423 = sand.u32 %s156, 1
        %s424 = smul.addr %s423, 128
        %s425 = scalar_lea.vmem [#allocation10], %s424
        %p426 = pneg %p169
        %p427 = pneg %p166
        %s428 = sld [smem:[#allocation4 + %s38]]
        %p429 = scmp.lt.s32.totalorder %s428, 2
        %s430 = scalar_select %p429, %s428, 2
        %s431 = smul.addr %s430, 4
        %s432 = scalar_lea.vmem %s6, %s431
        %p433 = pneg %p197
        %p434 = pneg %p194
        %p435 = pneg %p223
        %p436 = pneg %p220
        %s437 = sand.u32 %s210, 1
        %s438 = scalar_lea.sflag [#allocation7], %s437
        %s439 = sand.u32 %s210, 1
        %s440 = smul.addr %s439, 8
        %s441 = scalar_lea.vmem [#allocation11], %s440
        %p442 = pneg %p249
        %p443 = pneg %p246
        %s444 = sand.u32 %s236, 1
        %s445 = scalar_lea.sflag [#allocation13], %s444
        %s446 = sand.u32 %s236, 1
        %s447 = smul.addr %s446, 8
        %s448 = scalar_lea.vmem [#allocation12], %s447
        %p449 = scmp.lt.s32.totalorder %s38, 1
        %s450 = scalar_select %p449, %s38, 1
        %s451 = smul.addr %s450, 3
        %s452 = smul.addr %s451, 8
        %s453 = scalar_lea.vmem %s1, %s452
        %p454 = scmp.lt.s32.totalorder %s38, 1
        %s455 = scalar_select %p454, %s38, 1
        %s456 = smul.addr %s455, 2
        %s457 = smul.addr %s456, 8
        %s458 = scalar_lea.vmem %s2, %s457
        %s459 = sld [smem:[#allocation4 + %s38]]
        %s460 = sld [smem:[#allocation4 + %s38]]
        %s461 = sld [smem:[#allocation4 + %s38]]
        %s462 = sld [smem:[#allocation4 + %s38]]
        %p463 = scmp.lt.s32.totalorder %s462, 2
        %s464 = scalar_select %p463, %s462, 2
        %s465 = smul.addr %s464, 4
        %s466 = scalar_lea.vmem %s6, %s465
        %s467 = sld [smem:[#allocation4 + %s38]]
        %v468 = vld [vmem:[%s466] sm:$0x7]
        %p469 = scmp.eq.s32.totalorder %s38, 0
        // Predicated region
        $region57: #{tpu_custom_call.1} parent=43 // pred_check
          %p470 = pneg %p469
        $region58: #{tpu_custom_call.1} parent=43 // pred_check_branch
          %472 = sbr.rel (%p470) target = $region60
        $region59: #{tpu_custom_call.1} parent=43 // pred_region
          %473 = vst [vmem:[#allocation2 + $0x7] sm:$0x1] 0.0
          %474 = vst [vmem:[#allocation2 + $0x18] sm:$0x1] 0.0
        $region60: #{tpu_custom_call.1} parent=43 // pred_fallthru
          _
        %v475 = vld [vmem:[%s453] sm:$0xff]
        %v476 = vld [vmem:[%s453 + $0x8] sm:$0xff]
        %v477 = vld [vmem:[%s370] sm:$0xff]
        %v478 = vld [vmem:[%s370 + $0x8] sm:$0xff]
        %v479 = vld [vmem:[%s370 + $0x10] sm:$0xff]
        %v480 = vld [vmem:[%s370 + $0x18] sm:$0xff]
        %v481 = vld [vmem:[%s370 + $0x20] sm:$0xff]
        %v482 = vld [vmem:[%s370 + $0x28] sm:$0xff]
        %v483 = vld [vmem:[%s370 + $0x30] sm:$0xff]
        %v484 = vld [vmem:[%s370 + $0x38] sm:$0xff]
        %v485 = vld [vmem:[%s370 + $0x40] sm:$0xff]
        %v486 = vld [vmem:[%s370 + $0x48] sm:$0xff]
        %v487 = vld [vmem:[%s370 + $0x50] sm:$0xff]
        %v488 = vld [vmem:[%s370 + $0x58] sm:$0xff]
        %v489 = vld [vmem:[%s370 + $0x60] sm:$0xff]
        %v490 = vld [vmem:[%s370 + $0x68] sm:$0xff]
        %v491 = vld [vmem:[%s370 + $0x70] sm:$0xff]
        %v492 = vld [vmem:[%s370 + $0x78] sm:$0xff]
        %v493 = vld [vmem:[%s453 + $0x1] sm:$0xff]
        %v494 = vld [vmem:[%s453 + $0x9] sm:$0xff]
        %v495 = vld [vmem:[%s370 + $0x80] sm:$0xff]
        %v496 = vld [vmem:[%s370 + $0x88] sm:$0xff]
        %v497 = vld [vmem:[%s370 + $0x90] sm:$0xff]
        %v498 = vld [vmem:[%s370 + $0x98] sm:$0xff]
        %v499 = vld [vmem:[%s370 + $0xa0] sm:$0xff]
        %v500 = vld [vmem:[%s370 + $0xa8] sm:$0xff]
        %v501 = vld [vmem:[%s370 + $0xb0] sm:$0xff]
        %v502 = vld [vmem:[%s370 + $0xb8] sm:$0xff]
        %v503 = vld [vmem:[%s370 + $0xc0] sm:$0xff]
        %v504 = vld [vmem:[%s370 + $0xc8] sm:$0xff]
        %v505 = vld [vmem:[%s370 + $0xd0] sm:$0xff]
        %v506 = vld [vmem:[%s370 + $0xd8] sm:$0xff]
        %v507 = vld [vmem:[%s370 + $0xe0] sm:$0xff]
        %v508 = vld [vmem:[%s370 + $0xe8] sm:$0xff]
        %v509 = vld [vmem:[%s370 + $0xf0] sm:$0xff]
        %v510 = vld [vmem:[%s370 + $0xf8] sm:$0xff]
        %511 = vmatprep.subr.mxu0 0.0
        %512 = vmatpush1.msra.mxu0 %v495
        %513 = vmatprep.subr.mxu0 0.0
        %514 = vmatpush1.msra.mxu0 %v496
        %515 = vmatprep.subr.mxu0 0.0
        %516 = vmatpush1.msra.mxu0 %v497
        %517 = vmatprep.subr.mxu0 0.0
        %518 = vmatpush1.msra.mxu0 %v498
        %519 = vmatprep.subr.mxu0 0.0
        %520 = vmatpush1.msra.mxu0 %v499
        %521 = vmatprep.subr.mxu0 0.0
        %522 = vmatpush1.msra.mxu0 %v500
        %523 = vmatprep.subr.mxu0 0.0
        %524 = vmatpush1.msra.mxu0 %v501
        %525 = vmatprep.subr.mxu0 0.0
        %526 = vmatpush1.msra.mxu0 %v502
        %527 = vmatprep.subr.mxu0 0.0
        %528 = vmatpush1.msra.mxu0 %v503
        %529 = vmatprep.subr.mxu0 0.0
        %530 = vmatpush1.msra.mxu0 %v504
        %531 = vmatprep.subr.mxu0 0.0
        %532 = vmatpush1.msra.mxu0 %v505
        %533 = vmatprep.subr.mxu0 0.0
        %534 = vmatpush1.msra.mxu0 %v506
        %535 = vmatprep.subr.mxu0 0.0
        %536 = vmatpush1.msra.mxu0 %v507
        %537 = vmatprep.subr.mxu0 0.0
        %538 = vmatpush1.msra.mxu0 %v508
        %539 = vmatprep.subr.mxu0 0.0
        %540 = vmatpush1.msra.mxu0 %v509
        %541 = vmatprep.subr.mxu0 0.0
        %542 = vmatpush1.msra.mxu0 %v510
        %543 = vmatprep.subr.mxu0 0.0
        %544 = vmatpush1.msra.mxu0 0.0
        %545 = vmatprep.subr.mxu0 0.0
        %546 = vmatpush1.msra.mxu0 0.0
        %547 = vmatprep.subr.mxu0 0.0
        %548 = vmatpush1.msra.mxu0 0.0
        %549 = vmatprep.subr.mxu0 0.0
        %550 = vmatpush1.msra.mxu0 0.0
        %551 = vmatprep.subr.mxu0 0.0
        %552 = vmatpush1.msra.mxu0 0.0
        %553 = vmatprep.subr.mxu0 0.0
        %554 = vmatpush1.msra.mxu0 0.0
        %555 = vmatprep.subr.mxu0 0.0
        %556 = vmatpush1.msra.mxu0 0.0
        %557 = vmatprep.subr.mxu0 0.0
        %558 = vmatpush1.msra.mxu0 0.0
        %559 = vmatprep.subr.mxu0 0.0
        %560 = vmatpush1.msra.mxu0 0.0
        %561 = vmatprep.subr.mxu0 0.0
        %562 = vmatpush1.msra.mxu0 0.0
        %563 = vmatprep.subr.mxu0 0.0
        %564 = vmatpush1.msra.mxu0 0.0
        %565 = vmatprep.subr.mxu0 0.0
        %566 = vmatpush1.msra.mxu0 0.0
        %567 = vmatprep.subr.mxu0 0.0
        %568 = vmatpush1.msra.mxu0 0.0
        %569 = vmatprep.subr.mxu0 0.0
        %570 = vmatpush1.msra.mxu0 0.0
        %571 = vmatprep.subr.mxu0 0.0
        %572 = vmatpush1.msra.mxu0 0.0
        %573 = vmatprep.subr.mxu0 0.0
        %574 = vmatpush1.msra.mxu0 0.0
        %575 = vmatprep.mubr.f32.mxu0 0.0
        %576 = vmatmul.mubr.f32.gmra.mrb[0].mxu0 %v493
        %v577 = vpop.f32.mrb[0].mxu0
        %v578 = vadd.f32 0.0, %v577
        %v579 = vpop.f32.mrb[0].mxu0
        %580 = vmatprep.mubr.f32.mxu0 0.0
        %581 = vmatmul.mubr.f32.gmra.mrb[0].mxu0 %v494
        %v582 = vpop.f32.mrb[0].mxu0
        %v583 = vadd.f32 0.0, %v582
        %v584 = vpop.f32.mrb[0].mxu0
        %585 = vdwg.mxu0
        %586 = vmatprep.subr.mxu0 0.0
        %587 = vmatpush1.msra.mxu0 %v477
        %588 = vmatprep.subr.mxu0 0.0
        %589 = vmatpush1.msra.mxu0 %v478
        %590 = vmatprep.subr.mxu0 0.0
        %591 = vmatpush1.msra.mxu0 %v479
        %592 = vmatprep.subr.mxu0 0.0
        %593 = vmatpush1.msra.mxu0 %v480
        %594 = vmatprep.subr.mxu0 0.0
        %595 = vmatpush1.msra.mxu0 %v481
        %596 = vmatprep.subr.mxu0 0.0
        %597 = vmatpush1.msra.mxu0 %v482
        %598 = vmatprep.subr.mxu0 0.0
        %599 = vmatpush1.msra.mxu0 %v483
        %600 = vmatprep.subr.mxu0 0.0
        %601 = vmatpush1.msra.mxu0 %v484
        %602 = vmatprep.subr.mxu0 0.0
        %603 = vmatpush1.msra.mxu0 %v485
        %604 = vmatprep.subr.mxu0 0.0
        %605 = vmatpush1.msra.mxu0 %v486
        %606 = vmatprep.subr.mxu0 0.0
        %607 = vmatpush1.msra.mxu0 %v487
        %608 = vmatprep.subr.mxu0 0.0
        %609 = vmatpush1.msra.mxu0 %v488
        %610 = vmatprep.subr.mxu0 0.0
        %611 = vmatpush1.msra.mxu0 %v489
        %612 = vmatprep.subr.mxu0 0.0
        %613 = vmatpush1.msra.mxu0 %v490
        %614 = vmatprep.subr.mxu0 0.0
        %615 = vmatpush1.msra.mxu0 %v491
        %616 = vmatprep.subr.mxu0 0.0
        %617 = vmatpush1.msra.mxu0 %v492
        %618 = vmatprep.subr.mxu0 0.0
        %619 = vmatpush1.msra.mxu0 0.0
        %620 = vmatprep.subr.mxu0 0.0
        %621 = vmatpush1.msra.mxu0 0.0
        %622 = vmatprep.subr.mxu0 0.0
        %623 = vmatpush1.msra.mxu0 0.0
        %624 = vmatprep.subr.mxu0 0.0
        %625 = vmatpush1.msra.mxu0 0.0
        %626 = vmatprep.subr.mxu0 0.0
        %627 = vmatpush1.msra.mxu0 0.0
        %628 = vmatprep.subr.mxu0 0.0
        %629 = vmatpush1.msra.mxu0 0.0
        %630 = vmatprep.subr.mxu0 0.0
        %631 = vmatpush1.msra.mxu0 0.0
        %632 = vmatprep.subr.mxu0 0.0
        %633 = vmatpush1.msra.mxu0 0.0
        %634 = vmatprep.subr.mxu0 0.0
        %635 = vmatpush1.msra.mxu0 0.0
        %636 = vmatprep.subr.mxu0 0.0
        %637 = vmatpush1.msra.mxu0 0.0
        %638 = vmatprep.subr.mxu0 0.0
        %639 = vmatpush1.msra.mxu0 0.0
        %640 = vmatprep.subr.mxu0 0.0
        %641 = vmatpush1.msra.mxu0 0.0
        %642 = vmatprep.subr.mxu0 0.0
        %643 = vmatpush1.msra.mxu0 0.0
        %644 = vmatprep.subr.mxu0 0.0
        %645 = vmatpush1.msra.mxu0 0.0
        %646 = vmatprep.subr.mxu0 0.0
        %647 = vmatpush1.msra.mxu0 0.0
        %648 = vmatprep.subr.mxu0 0.0
        %649 = vmatpush1.msra.mxu0 0.0
        %650 = vmatprep.mubr.f32.mxu0 0.0
        %651 = vmatmul.mubr.f32.gmra.mrb[0].mxu0 %v475
        %v652 = vpop.f32.mrb[0].mxu0
        %v653 = vadd.f32 %v578, %v652
        %v654 = vpop.f32.mrb[0].mxu0
        %655 = vmatprep.mubr.f32.mxu0 0.0
        %656 = vmatmul.mubr.f32.gmra.mrb[0].mxu0 %v476
        %v657 = vpop.f32.mrb[0].mxu0
        %v658 = vadd.f32 %v583, %v657
        %v659 = vpop.f32.mrb[0].mxu0
        %660 = vdwg.mxu0
        %v661 = vld [vmem:[%s453 + $0x2] sm:$0xff]
        %v662 = vld [vmem:[%s453 + $0xa] sm:$0xff]
        %v663 = vld [vmem:[%s370 + $0x100] sm:$0xff]
        %v664 = vld [vmem:[%s370 + $0x108] sm:$0xff]
        %v665 = vld [vmem:[%s370 + $0x110] sm:$0xff]
        %v666 = vld [vmem:[%s370 + $0x118] sm:$0xff]
        %v667 = vld [vmem:[%s370 + $0x120] sm:$0xff]
        %v668 = vld [vmem:[%s370 + $0x128] sm:$0xff]
        %v669 = vld [vmem:[%s370 + $0x130] sm:$0xff]
        %v670 = vld [vmem:[%s370 + $0x138] sm:$0xff]
        %v671 = vld [vmem:[%s370 + $0x140] sm:$0xff]
        %v672 = vld [vmem:[%s370 + $0x148] sm:$0xff]
        %v673 = vld [vmem:[%s370 + $0x150] sm:$0xff]
        %v674 = vld [vmem:[%s370 + $0x158] sm:$0xff]
        %v675 = vld [vmem:[%s370 + $0x160] sm:$0xff]
        %v676 = vld [vmem:[%s370 + $0x168] sm:$0xff]
        %v677 = vld [vmem:[%s370 + $0x170] sm:$0xff]
        %v678 = vld [vmem:[%s370 + $0x178] sm:$0xff]
        %679 = vmatprep.subr.mxu0 0.0
        %680 = vmatpush1.msra.mxu0 %v663
        %681 = vmatprep.subr.mxu0 0.0
        %682 = vmatpush1.msra.mxu0 %v664
        %683 = vmatprep.subr.mxu0 0.0
        %684 = vmatpush1.msra.mxu0 %v665
        %685 = vmatprep.subr.mxu0 0.0
        %686 = vmatpush1.msra.mxu0 %v666
        %687 = vmatprep.subr.mxu0 0.0
        %688 = vmatpush1.msra.mxu0 %v667
        %689 = vmatprep.subr.mxu0 0.0
        %690 = vmatpush1.msra.mxu0 %v668
        %691 = vmatprep.subr.mxu0 0.0
        %692 = vmatpush1.msra.mxu0 %v669
        %693 = vmatprep.subr.mxu0 0.0
        %694 = vmatpush1.msra.mxu0 %v670
        %695 = vmatprep.subr.mxu0 0.0
        %696 = vmatpush1.msra.mxu0 %v671
        %697 = vmatprep.subr.mxu0 0.0
        %698 = vmatpush1.msra.mxu0 %v672
        %699 = vmatprep.subr.mxu0 0.0
        %700 = vmatpush1.msra.mxu0 %v673
        %701 = vmatprep.subr.mxu0 0.0
        %702 = vmatpush1.msra.mxu0 %v674
        %703 = vmatprep.subr.mxu0 0.0
        %704 = vmatpush1.msra.mxu0 %v675
        %705 = vmatprep.subr.mxu0 0.0
        %706 = vmatpush1.msra.mxu0 %v676
        %707 = vmatprep.subr.mxu0 0.0
        %708 = vmatpush1.msra.mxu0 %v677
        %709 = vmatprep.subr.mxu0 0.0
        %710 = vmatpush1.msra.mxu0 %v678
        %711 = vmatprep.subr.mxu0 0.0
        %712 = vmatpush1.msra.mxu0 0.0
        %713 = vmatprep.subr.mxu0 0.0
        %714 = vmatpush1.msra.mxu0 0.0
        %715 = vmatprep.subr.mxu0 0.0
        %716 = vmatpush1.msra.mxu0 0.0
        %717 = vmatprep.subr.mxu0 0.0
        %718 = vmatpush1.msra.mxu0 0.0
        %719 = vmatprep.subr.mxu0 0.0
        %720 = vmatpush1.msra.mxu0 0.0
        %721 = vmatprep.subr.mxu0 0.0
        %722 = vmatpush1.msra.mxu0 0.0
        %723 = vmatprep.subr.mxu0 0.0
        %724 = vmatpush1.msra.mxu0 0.0
        %725 = vmatprep.subr.mxu0 0.0
        %726 = vmatpush1.msra.mxu0 0.0
        %727 = vmatprep.subr.mxu0 0.0
        %728 = vmatpush1.msra.mxu0 0.0
        %729 = vmatprep.subr.mxu0 0.0
        %730 = vmatpush1.msra.mxu0 0.0
        %731 = vmatprep.subr.mxu0 0.0
        %732 = vmatpush1.msra.mxu0 0.0
        %733 = vmatprep.subr.mxu0 0.0
        %734 = vmatpush1.msra.mxu0 0.0
        %735 = vmatprep.subr.mxu0 0.0
        %736 = vmatpush1.msra.mxu0 0.0
        %737 = vmatprep.subr.mxu0 0.0
        %738 = vmatpush1.msra.mxu0 0.0
        %739 = vmatprep.subr.mxu0 0.0
        %740 = vmatpush1.msra.mxu0 0.0
        %741 = vmatprep.subr.mxu0 0.0
        %742 = vmatpush1.msra.mxu0 0.0
        %743 = vmatprep.mubr.f32.mxu0 0.0
        %744 = vmatmul.mubr.f32.gmra.mrb[0].mxu0 %v661
        %v745 = vpop.f32.mrb[0].mxu0
        %v746 = vadd.f32 0.0, %v745
        %v747 = vpop.f32.mrb[0].mxu0
        %748 = vmatprep.mubr.f32.mxu0 0.0
        %749 = vmatmul.mubr.f32.gmra.mrb[0].mxu0 %v662
        %v750 = vpop.f32.mrb[0].mxu0
        %v751 = vadd.f32 0.0, %v750
        %v752 = vpop.f32.mrb[0].mxu0
        %753 = vdwg.mxu0
        %v754 = vadd.f32 %v653, %v746
        %v755 = vadd.f32 %v658, %v751
        %v756 = vlaneseq
        %v757 = vshrl.u32 %v756, 7
        %v758 = vsub.s32 0, %v757
        %v759 = vrot.slane %v468, %v758
        %v760 = vadd.f32 %v754, %v759
        %v761 = vadd.f32 %v755, %v759
        %v762 = vmax.f32 %v760, 0.0
        %v763 = vmax.f32 %v761, 0.0
        %764 = vst [vmem:[#allocation2 + $0x8] sm:$0xff] %v762
        %765 = vst [vmem:[#allocation2 + $0x10] sm:$0xff] %v763
        %s766 = scalar_lea.vmem [#allocation2], 7
        %v767 = vld [vmem:[%s766] ss:$2 sm:$0xff]
        %v768 = vld [vmem:[%s379] sm:$0xff]
        %v769 = vld [vmem:[%s379 + $0x8] sm:$0xff]
        %v770 = vld [vmem:[%s379 + $0x10] sm:$0xff]
        %v771 = vld [vmem:[%s379 + $0x18] sm:$0xff]
        %v772 = vld [vmem:[%s379 + $0x20] sm:$0xff]
        %v773 = vld [vmem:[%s379 + $0x28] sm:$0xff]
        %v774 = vld [vmem:[%s379 + $0x30] sm:$0xff]
        %v775 = vld [vmem:[%s379 + $0x38] sm:$0xff]
        %v776 = vld [vmem:[%s379 + $0x40] sm:$0xff]
        %v777 = vld [vmem:[%s379 + $0x48] sm:$0xff]
        %v778 = vld [vmem:[%s379 + $0x50] sm:$0xff]
        %v779 = vld [vmem:[%s379 + $0x58] sm:$0xff]
        %v780 = vld [vmem:[%s379 + $0x60] sm:$0xff]
        %v781 = vld [vmem:[%s379 + $0x68] sm:$0xff]
        %v782 = vld [vmem:[%s379 + $0x70] sm:$0xff]
        %v783 = vld [vmem:[%s379 + $0x78] sm:$0xff]
        %s784 = scalar_lea.vmem [#allocation2], 8
        %v785 = vld [vmem:[%s784] ss:$2 sm:$0xff]
        %v786 = vld [vmem:[%s379 + $0x80] sm:$0xff]
        %v787 = vld [vmem:[%s379 + $0x88] sm:$0xff]
        %v788 = vld [vmem:[%s379 + $0x90] sm:$0xff]
        %v789 = vld [vmem:[%s379 + $0x98] sm:$0xff]
        %v790 = vld [vmem:[%s379 + $0xa0] sm:$0xff]
        %v791 = vld [vmem:[%s379 + $0xa8] sm:$0xff]
        %v792 = vld [vmem:[%s379 + $0xb0] sm:$0xff]
        %v793 = vld [vmem:[%s379 + $0xb8] sm:$0xff]
        %v794 = vld [vmem:[%s379 + $0xc0] sm:$0xff]
        %v795 = vld [vmem:[%s379 + $0xc8] sm:$0xff]
        %v796 = vld [vmem:[%s379 + $0xd0] sm:$0xff]
        %v797 = vld [vmem:[%s379 + $0xd8] sm:$0xff]
        %v798 = vld [vmem:[%s379 + $0xe0] sm:$0xff]
        %v799 = vld [vmem:[%s379 + $0xe8] sm:$0xff]
        %v800 = vld [vmem:[%s379 + $0xf0] sm:$0xff]
        %v801 = vld [vmem:[%s379 + $0xf8] sm:$0xff]
        %802 = vmatprep.subr.mxu0 0.0
        %803 = vmatpush1.msra.mxu0 %v786
        %804 = vmatprep.subr.mxu0 0.0
        %805 = vmatpush1.msra.mxu0 %v787
        %806 = vmatprep.subr.mxu0 0.0
        %807 = vmatpush1.msra.mxu0 %v788
        %808 = vmatprep.subr.mxu0 0.0
        %809 = vmatpush1.msra.mxu0 %v789
        %810 = vmatprep.subr.mxu0 0.0
        %811 = vmatpush1.msra.mxu0 %v790
        %812 = vmatprep.subr.mxu0 0.0
        %813 = vmatpush1.msra.mxu0 %v791
        %814 = vmatprep.subr.mxu0 0.0
        %815 = vmatpush1.msra.mxu0 %v792
        %816 = vmatprep.subr.mxu0 0.0
        %817 = vmatpush1.msra.mxu0 %v793
        %818 = vmatprep.subr.mxu0 0.0
        %819 = vmatpush1.msra.mxu0 %v794
        %820 = vmatprep.subr.mxu0 0.0
        %821 = vmatpush1.msra.mxu0 %v795
        %822 = vmatprep.subr.mxu0 0.0
        %823 = vmatpush1.msra.mxu0 %v796
        %824 = vmatprep.subr.mxu0 0.0
        %825 = vmatpush1.msra.mxu0 %v797
        %826 = vmatprep.subr.mxu0 0.0
        %827 = vmatpush1.msra.mxu0 %v798
        %828 = vmatprep.subr.mxu0 0.0
        %829 = vmatpush1.msra.mxu0 %v799
        %830 = vmatprep.subr.mxu0 0.0
        %831 = vmatpush1.msra.mxu0 %v800
        %832 = vmatprep.subr.mxu0 0.0
        %833 = vmatpush1.msra.mxu0 %v801
        %834 = vmatprep.subr.mxu0 0.0
        %835 = vmatpush1.msra.mxu0 0.0
        %836 = vmatprep.subr.mxu0 0.0
        %837 = vmatpush1.msra.mxu0 0.0
        %838 = vmatprep.subr.mxu0 0.0
        %839 = vmatpush1.msra.mxu0 0.0
        %840 = vmatprep.subr.mxu0 0.0
        %841 = vmatpush1.msra.mxu0 0.0
        %842 = vmatprep.subr.mxu0 0.0
        %843 = vmatpush1.msra.mxu0 0.0
        %844 = vmatprep.subr.mxu0 0.0
        %845 = vmatpush1.msra.mxu0 0.0
        %846 = vmatprep.subr.mxu0 0.0
        %847 = vmatpush1.msra.mxu0 0.0
        %848 = vmatprep.subr.mxu0 0.0
        %849 = vmatpush1.msra.mxu0 0.0
        %850 = vmatprep.subr.mxu0 0.0
        %851 = vmatpush1.msra.mxu0 0.0
        %852 = vmatprep.subr.mxu0 0.0
        %853 = vmatpush1.msra.mxu0 0.0
        %854 = vmatprep.subr.mxu0 0.0
        %855 = vmatpush1.msra.mxu0 0.0
        %856 = vmatprep.subr.mxu0 0.0
        %857 = vmatpush1.msra.mxu0 0.0
        %858 = vmatprep.subr.mxu0 0.0
        %859 = vmatpush1.msra.mxu0 0.0
        %860 = vmatprep.subr.mxu0 0.0
        %861 = vmatpush1.msra.mxu0 0.0
        %862 = vmatprep.subr.mxu0 0.0
        %863 = vmatpush1.msra.mxu0 0.0
        %864 = vmatprep.subr.mxu0 0.0
        %865 = vmatpush1.msra.mxu0 0.0
        %866 = vmatprep.mubr.f32.mxu0 0.0
        %867 = vmatmul.mubr.f32.gmra.mrb[0].mxu0 %v785
        %v868 = vpop.f32.mrb[0].mxu0
        %v869 = vadd.f32 0.0, %v868
        %v870 = vpop.f32.mrb[0].mxu0
        %871 = vdwg.mxu0
        %872 = vmatprep.subr.mxu0 0.0
        %873 = vmatpush1.msra.mxu0 %v768
        %874 = vmatprep.subr.mxu0 0.0
        %875 = vmatpush1.msra.mxu0 %v769
        %876 = vmatprep.subr.mxu0 0.0
        %877 = vmatpush1.msra.mxu0 %v770
        %878 = vmatprep.subr.mxu0 0.0
        %879 = vmatpush1.msra.mxu0 %v771
        %880 = vmatprep.subr.mxu0 0.0
        %881 = vmatpush1.msra.mxu0 %v772
        %882 = vmatprep.subr.mxu0 0.0
        %883 = vmatpush1.msra.mxu0 %v773
        %884 = vmatprep.subr.mxu0 0.0
        %885 = vmatpush1.msra.mxu0 %v774
        %886 = vmatprep.subr.mxu0 0.0
        %887 = vmatpush1.msra.mxu0 %v775
        %888 = vmatprep.subr.mxu0 0.0
        %889 = vmatpush1.msra.mxu0 %v776
        %890 = vmatprep.subr.mxu0 0.0
        %891 = vmatpush1.msra.mxu0 %v777
        %892 = vmatprep.subr.mxu0 0.0
        %893 = vmatpush1.msra.mxu0 %v778
        %894 = vmatprep.subr.mxu0 0.0
        %895 = vmatpush1.msra.mxu0 %v779
        %896 = vmatprep.subr.mxu0 0.0
        %897 = vmatpush1.msra.mxu0 %v780
        %898 = vmatprep.subr.mxu0 0.0
        %899 = vmatpush1.msra.mxu0 %v781
        %900 = vmatprep.subr.mxu0 0.0
        %901 = vmatpush1.msra.mxu0 %v782
        %902 = vmatprep.subr.mxu0 0.0
        %903 = vmatpush1.msra.mxu0 %v783
        %904 = vmatprep.subr.mxu0 0.0
        %905 = vmatpush1.msra.mxu0 0.0
        %906 = vmatprep.subr.mxu0 0.0
        %907 = vmatpush1.msra.mxu0 0.0
        %908 = vmatprep.subr.mxu0 0.0
        %909 = vmatpush1.msra.mxu0 0.0
        %910 = vmatprep.subr.mxu0 0.0
        %911 = vmatpush1.msra.mxu0 0.0
        %912 = vmatprep.subr.mxu0 0.0
        %913 = vmatpush1.msra.mxu0 0.0
        %914 = vmatprep.subr.mxu0 0.0
        %915 = vmatpush1.msra.mxu0 0.0
        %916 = vmatprep.subr.mxu0 0.0
        %917 = vmatpush1.msra.mxu0 0.0
        %918 = vmatprep.subr.mxu0 0.0
        %919 = vmatpush1.msra.mxu0 0.0
        %920 = vmatprep.subr.mxu0 0.0
        %921 = vmatpush1.msra.mxu0 0.0
        %922 = vmatprep.subr.mxu0 0.0
        %923 = vmatpush1.msra.mxu0 0.0
        %924 = vmatprep.subr.mxu0 0.0
        %925 = vmatpush1.msra.mxu0 0.0
        %926 = vmatprep.subr.mxu0 0.0
        %927 = vmatpush1.msra.mxu0 0.0
        %928 = vmatprep.subr.mxu0 0.0
        %929 = vmatpush1.msra.mxu0 0.0
        %930 = vmatprep.subr.mxu0 0.0
        %931 = vmatpush1.msra.mxu0 0.0
        %932 = vmatprep.subr.mxu0 0.0
        %933 = vmatpush1.msra.mxu0 0.0
        %934 = vmatprep.subr.mxu0 0.0
        %935 = vmatpush1.msra.mxu0 0.0
        %936 = vmatprep.mubr.f32.mxu0 0.0
        %937 = vmatmul.mubr.f32.gmra.mrb[0].mxu0 %v767
        %v938 = vpop.f32.mrb[0].mxu0
        %v939 = vadd.f32 %v869, %v938
        %v940 = vpop.f32.mrb[0].mxu0
        %941 = vdwg.mxu0
        %s942 = scalar_lea.vmem [#allocation2], 9
        %v943 = vld [vmem:[%s942] ss:$2 sm:$0xff]
        %v944 = vld [vmem:[%s379 + $0x100] sm:$0xff]
        %v945 = vld [vmem:[%s379 + $0x108] sm:$0xff]
        %v946 = vld [vmem:[%s379 + $0x110] sm:$0xff]
        %v947 = vld [vmem:[%s379 + $0x118] sm:$0xff]
        %v948 = vld [vmem:[%s379 + $0x120] sm:$0xff]
        %v949 = vld [vmem:[%s379 + $0x128] sm:$0xff]
        %v950 = vld [vmem:[%s379 + $0x130] sm:$0xff]
        %v951 = vld [vmem:[%s379 + $0x138] sm:$0xff]
        %v952 = vld [vmem:[%s379 + $0x140] sm:$0xff]
        %v953 = vld [vmem:[%s379 + $0x148] sm:$0xff]
        %v954 = vld [vmem:[%s379 + $0x150] sm:$0xff]
        %v955 = vld [vmem:[%s379 + $0x158] sm:$0xff]
        %v956 = vld [vmem:[%s379 + $0x160] sm:$0xff]
        %v957 = vld [vmem:[%s379 + $0x168] sm:$0xff]
        %v958 = vld [vmem:[%s379 + $0x170] sm:$0xff]
        %v959 = vld [vmem:[%s379 + $0x178] sm:$0xff]
        %960 = vmatprep.subr.mxu0 0.0
        %961 = vmatpush1.msra.mxu0 %v944
        %962 = vmatprep.subr.mxu0 0.0
        %963 = vmatpush1.msra.mxu0 %v945
        %964 = vmatprep.subr.mxu0 0.0
        %965 = vmatpush1.msra.mxu0 %v946
        %966 = vmatprep.subr.mxu0 0.0
        %967 = vmatpush1.msra.mxu0 %v947
        %968 = vmatprep.subr.mxu0 0.0
        %969 = vmatpush1.msra.mxu0 %v948
        %970 = vmatprep.subr.mxu0 0.0
        %971 = vmatpush1.msra.mxu0 %v949
        %972 = vmatprep.subr.mxu0 0.0
        %973 = vmatpush1.msra.mxu0 %v950
        %974 = vmatprep.subr.mxu0 0.0
        %975 = vmatpush1.msra.mxu0 %v951
        %976 = vmatprep.subr.mxu0 0.0
        %977 = vmatpush1.msra.mxu0 %v952
        %978 = vmatprep.subr.mxu0 0.0
        %979 = vmatpush1.msra.mxu0 %v953
        %980 = vmatprep.subr.mxu0 0.0
        %981 = vmatpush1.msra.mxu0 %v954
        %982 = vmatprep.subr.mxu0 0.0
        %983 = vmatpush1.msra.mxu0 %v955
        %984 = vmatprep.subr.mxu0 0.0
        %985 = vmatpush1.msra.mxu0 %v956
        %986 = vmatprep.subr.mxu0 0.0
        %987 = vmatpush1.msra.mxu0 %v957
        %988 = vmatprep.subr.mxu0 0.0
        %989 = vmatpush1.msra.mxu0 %v958
        %990 = vmatprep.subr.mxu0 0.0
        %991 = vmatpush1.msra.mxu0 %v959
        %992 = vmatprep.subr.mxu0 0.0
        %993 = vmatpush1.msra.mxu0 0.0
        %994 = vmatprep.subr.mxu0 0.0
        %995 = vmatpush1.msra.mxu0 0.0
        %996 = vmatprep.subr.mxu0 0.0
        %997 = vmatpush1.msra.mxu0 0.0
        %998 = vmatprep.subr.mxu0 0.0
        %999 = vmatpush1.msra.mxu0 0.0
        %1000 = vmatprep.subr.mxu0 0.0
        %1001 = vmatpush1.msra.mxu0 0.0
        %1002 = vmatprep.subr.mxu0 0.0
        %1003 = vmatpush1.msra.mxu0 0.0
        %1004 = vmatprep.subr.mxu0 0.0
        %1005 = vmatpush1.msra.mxu0 0.0
        %1006 = vmatprep.subr.mxu0 0.0
        %1007 = vmatpush1.msra.mxu0 0.0
        %1008 = vmatprep.subr.mxu0 0.0
        %1009 = vmatpush1.msra.mxu0 0.0
        %1010 = vmatprep.subr.mxu0 0.0
        %1011 = vmatpush1.msra.mxu0 0.0
        %1012 = vmatprep.subr.mxu0 0.0
        %1013 = vmatpush1.msra.mxu0 0.0
        %1014 = vmatprep.subr.mxu0 0.0
        %1015 = vmatpush1.msra.mxu0 0.0
        %1016 = vmatprep.subr.mxu0 0.0
        %1017 = vmatpush1.msra.mxu0 0.0
        %1018 = vmatprep.subr.mxu0 0.0
        %1019 = vmatpush1.msra.mxu0 0.0
        %1020 = vmatprep.subr.mxu0 0.0
        %1021 = vmatpush1.msra.mxu0 0.0
        %1022 = vmatprep.subr.mxu0 0.0
        %1023 = vmatpush1.msra.mxu0 0.0
        %1024 = vmatprep.mubr.f32.mxu0 0.0
        %1025 = vmatmul.mubr.f32.gmra.mrb[0].mxu0 %v943
        %v1026 = vpop.f32.mrb[0].mxu0
        %v1027 = vadd.f32 0.0, %v1026
        %v1028 = vpop.f32.mrb[0].mxu0
        %1029 = vdwg.mxu0
        %v1030 = vadd.f32 %v939, %v1027
        %v1031 = vld [vmem:[%s458] ss:$2 sm:$0xff]
        %s1032 = scalar_lea.vmem %s458, 1
        %v1033 = vld [vmem:[%s1032] ss:$2 sm:$0xff]
        %v1034 = vmax.f32 %v1031, %v1033
        %v1035 = vld [vmem:[%s388] sm:$0xff]
        %v1036 = vld [vmem:[%s388 + $0x8] sm:$0xff]
        %v1037 = vld [vmem:[%s388 + $0x10] sm:$0xff]
        %v1038 = vld [vmem:[%s388 + $0x18] sm:$0xff]
        %v1039 = vld [vmem:[%s388 + $0x20] sm:$0xff]
        %v1040 = vld [vmem:[%s388 + $0x28] sm:$0xff]
        %v1041 = vld [vmem:[%s388 + $0x30] sm:$0xff]
        %v1042 = vld [vmem:[%s388 + $0x38] sm:$0xff]
        %v1043 = vld [vmem:[%s388 + $0x40] sm:$0xff]
        %v1044 = vld [vmem:[%s388 + $0x48] sm:$0xff]
        %v1045 = vld [vmem:[%s388 + $0x50] sm:$0xff]
        %v1046 = vld [vmem:[%s388 + $0x58] sm:$0xff]
        %v1047 = vld [vmem:[%s388 + $0x60] sm:$0xff]
        %v1048 = vld [vmem:[%s388 + $0x68] sm:$0xff]
        %v1049 = vld [vmem:[%s388 + $0x70] sm:$0xff]
        %v1050 = vld [vmem:[%s388 + $0x78] sm:$0xff]
        %1051 = vmatprep.subr.mxu0 0.0
        %1052 = vmatpush1.msra.mxu0 %v1035
        %1053 = vmatprep.subr.mxu0 0.0
        %1054 = vmatpush1.msra.mxu0 %v1036
        %1055 = vmatprep.subr.mxu0 0.0
        %1056 = vmatpush1.msra.mxu0 %v1037
        %1057 = vmatprep.subr.mxu0 0.0
        %1058 = vmatpush1.msra.mxu0 %v1038
        %1059 = vmatprep.subr.mxu0 0.0
        %1060 = vmatpush1.msra.mxu0 %v1039
        %1061 = vmatprep.subr.mxu0 0.0
        %1062 = vmatpush1.msra.mxu0 %v1040
        %1063 = vmatprep.subr.mxu0 0.0
        %1064 = vmatpush1.msra.mxu0 %v1041
        %1065 = vmatprep.subr.mxu0 0.0
        %1066 = vmatpush1.msra.mxu0 %v1042
        %1067 = vmatprep.subr.mxu0 0.0
        %1068 = vmatpush1.msra.mxu0 %v1043
        %1069 = vmatprep.subr.mxu0 0.0
        %1070 = vmatpush1.msra.mxu0 %v1044
        %1071 = vmatprep.subr.mxu0 0.0
        %1072 = vmatpush1.msra.mxu0 %v1045
        %1073 = vmatprep.subr.mxu0 0.0
        %1074 = vmatpush1.msra.mxu0 %v1046
        %1075 = vmatprep.subr.mxu0 0.0
        %1076 = vmatpush1.msra.mxu0 %v1047
        %1077 = vmatprep.subr.mxu0 0.0
        %1078 = vmatpush1.msra.mxu0 %v1048
        %1079 = vmatprep.subr.mxu0 0.0
        %1080 = vmatpush1.msra.mxu0 %v1049
        %1081 = vmatprep.subr.mxu0 0.0
        %1082 = vmatpush1.msra.mxu0 %v1050
        %1083 = vmatprep.subr.mxu0 0.0
        %1084 = vmatpush1.msra.mxu0 0.0
        %1085 = vmatprep.subr.mxu0 0.0
        %1086 = vmatpush1.msra.mxu0 0.0
        %1087 = vmatprep.subr.mxu0 0.0
        %1088 = vmatpush1.msra.mxu0 0.0
        %1089 = vmatprep.subr.mxu0 0.0
        %1090 = vmatpush1.msra.mxu0 0.0
        %1091 = vmatprep.subr.mxu0 0.0
        %1092 = vmatpush1.msra.mxu0 0.0
        %1093 = vmatprep.subr.mxu0 0.0
        %1094 = vmatpush1.msra.mxu0 0.0
        %1095 = vmatprep.subr.mxu0 0.0
        %1096 = vmatpush1.msra.mxu0 0.0
        %1097 = vmatprep.subr.mxu0 0.0
        %1098 = vmatpush1.msra.mxu0 0.0
        %1099 = vmatprep.subr.mxu0 0.0
        %1100 = vmatpush1.msra.mxu0 0.0
        %1101 = vmatprep.subr.mxu0 0.0
        %1102 = vmatpush1.msra.mxu0 0.0
        %1103 = vmatprep.subr.mxu0 0.0
        %1104 = vmatpush1.msra.mxu0 0.0
        %1105 = vmatprep.subr.mxu0 0.0
        %1106 = vmatpush1.msra.mxu0 0.0
        %1107 = vmatprep.subr.mxu0 0.0
        %1108 = vmatpush1.msra.mxu0 0.0
        %1109 = vmatprep.subr.mxu0 0.0
        %1110 = vmatpush1.msra.mxu0 0.0
        %1111 = vmatprep.subr.mxu0 0.0
        %1112 = vmatpush1.msra.mxu0 0.0
        %1113 = vmatprep.subr.mxu0 0.0
        %1114 = vmatpush1.msra.mxu0 0.0
        %1115 = vmatprep.mubr.f32.mxu0 0.0
        %1116 = vmatmul.mubr.f32.gmra.mrb[0].mxu0 %v1034
        %v1117 = vpop.f32.mrb[0].mxu0
        %v1118 = vadd.f32 0.0, %v1117
        %v1119 = vpop.f32.mrb[0].mxu0
        %1120 = vdwg.mxu0
        %v1121 = vadd.f32 %v1030, %v1118
        %1122 = vst [vmem:[%s448] sm:$0xff] %v1121
        %v1123 = vlaneseq
        %v1124 = vshrl.u32 %v1123, 7
        %v1125 = vsub.s32 1, %v1124
        %v1126 = vrot.slane %v468, %v1125
        %v1127 = vmul.f32 %v1121, %v1126
        %v1128 = vlaneseq
        %v1129 = vshrl.u32 %v1128, 7
        %v1130 = vsub.s32 2, %v1129
        %v1131 = vrot.slane %v468, %v1130
        %v1132 = vadd.f32 %v1127, %v1131
        %v1133 = vmax.f32 %v1132, 0.0
        %1134 = vst [vmem:[%s441] sm:$0xff] %v1133
        %s1135 = sand.u32 %s210, 1
        %s1136 = scalar_lea.sflag [#allocation7], %s1135
        %s1137 = sand.u32 %s210, 1
        %s1138 = smul.addr %s1137, 8
        %s1139 = scalar_lea.vmem [#allocation11], %s1138
        %s1140 = sand.u32 %s236, 1
        %s1141 = scalar_lea.sflag [#allocation13], %s1140
        %s1142 = sand.u32 %s236, 1
        %s1143 = smul.addr %s1142, 8
        %s1144 = scalar_lea.vmem [#allocation12], %s1143
        // Predicated region
        $region61: #{tpu_custom_call.1} parent=43 // pred_check
          %p1145 = pneg %p220
        $region62: #{tpu_custom_call.1} parent=43 // pred_check_branch
          %1147 = sbr.rel (%p1145) target = $region64
        $region63: #{tpu_custom_call.1} parent=43 // pred_region
          %s1149 = ssub.s32 128, 128
          %1150 = vsyncadd %s1136, %s1149
          %s1151 = smul.addr %s38, 128
          %s1152 = scalar_lea.hbm %s7, %s1151
          %s1154 = sshll.u32 %s1139, 4
          %s1155 = int_to_ptr.vmem [resolvable:$true] %s1154
          %1157 = dma.vmem_to_hbm [thread:$0]  %s1155, 128, %s1152, %s1136
        $region64: #{tpu_custom_call.1} parent=43 // pred_fallthru
          _
        // Predicated region
        $region65: #{tpu_custom_call.1} parent=43 // pred_check
          %p1158 = pneg %p246
        $region66: #{tpu_custom_call.1} parent=43 // pred_check_branch
          %1160 = sbr.rel (%p1158) target = $region68
        $region67: #{tpu_custom_call.1} parent=43 // pred_region
          %s1162 = ssub.s32 128, 128
          %1163 = vsyncadd %s1141, %s1162
          %s1164 = smul.addr %s38, 128
          %s1165 = scalar_lea.hbm %s8, %s1164
          %s1167 = sshll.u32 %s1144, 4
          %s1168 = int_to_ptr.vmem [resolvable:$true] %s1167
          %1170 = dma.vmem_to_hbm [thread:$0]  %s1168, 128, %s1165, %s1141
        $region68: #{tpu_custom_call.1} parent=43 // pred_fallthru
          _
      $region44: #{tpu_custom_call.1} parent=5 // pred_fallthru
        _
      %p1171 = scmp.le.s32.totalorder 2, %s33
      // Predicated region
      $region69: #{tpu_custom_call.1} parent=5 // pred_check
        %p1172 = pneg %p1171
      $region70: #{tpu_custom_call.1} parent=5 // pred_check_branch
        %1174 = sbr.rel (%p1172) target = $region72
      $region71: #{tpu_custom_call.1} parent=5 // pred_region
        %s1175 = ssub.s32 %s33, 2
        // Predicated region
        $region73: #{tpu_custom_call.1} parent=71 // pred_check
          %p1176 = pneg %p226
        $region74: #{tpu_custom_call.1} parent=71 // pred_check_branch
          %1178 = sbr.rel (%p1176) target = $region76
        $region75: #{tpu_custom_call.1} parent=71 // pred_region
          %s1179 = sand.u32 %s211, 1
          %s1180 = scalar_lea.sflag [#allocation7], %s1179
          %s1181 = sand.u32 %s211, 1
          %s1182 = smul.addr %s1181, 8
          %s1183 = scalar_lea.vmem [#allocation11], %s1182
          %1184 = dma.done %s1180, 128
        $region76: #{tpu_custom_call.1} parent=71 // pred_fallthru
          _
        // Predicated region
        $region77: #{tpu_custom_call.1} parent=71 // pred_check
          %p1185 = pneg %p252
        $region78: #{tpu_custom_call.1} parent=71 // pred_check_branch
          %1187 = sbr.rel (%p1185) target = $region80
        $region79: #{tpu_custom_call.1} parent=71 // pred_region
          %s1188 = sand.u32 %s237, 1
          %s1189 = scalar_lea.sflag [#allocation13], %s1188
          %s1190 = sand.u32 %s237, 1
          %s1191 = smul.addr %s1190, 8
          %s1192 = scalar_lea.vmem [#allocation12], %s1191
          %1193 = dma.done %s1189, 128
        $region80: #{tpu_custom_call.1} parent=71 // pred_fallthru
          _
      $region72: #{tpu_custom_call.1} parent=5 // pred_fallthru
        _
    $region6: #{tpu_custom_call.1} parent=1 // loop_footer
      %s37 = sadd.s32 1, %s33
    $region7: #{tpu_custom_call.1} parent=1 // loop_footer_branch
      %32 = sbr.rel target = $region3
    $region8: #{tpu_custom_call.1} parent=1 // loop_exit
      _
    %1194 = vsyncpa [#allocation6], 1
    %s1195 = scalar_lea.sflag [#allocation6], 1
    %1196 = vsyncpa %s1195, 1
    %1197 = vsyncpa [#allocation9], 1
    %s1198 = scalar_lea.sflag [#allocation9], 1
    %1199 = vsyncpa %s1198, 1
    %1200 = vsyncpa [#allocation7], 1
    %s1201 = scalar_lea.sflag [#allocation7], 1
    %1202 = vsyncpa %s1201, 1
    %1203 = vsyncpa [#allocation13], 1
    %s1204 = scalar_lea.sflag [#allocation13], 1
    %1205 = vsyncpa %s1204, 1

</llo_original>
